<compile_context>
chip_gen: v7x
topology: tpu7x:2x2x1
jax: 0.10.0
libtpu: 0.0.40
codegen_flags: <defaults>
</compile_context>

<pallas_src>
import math
from functools import partial

import jax
import jax.numpy as jnp
from jax import lax
from jax.experimental import pallas as pl
from jax.experimental.pallas import tpu as pltpu

_INV_SQRT2 = 1.0 / math.sqrt(2.0)


def _gelu_exact(x):
    # Matches torch.nn.functional.gelu default (erf-based, exact).
    return 0.5 * x * (1.0 + lax.erf(x * _INV_SQRT2))


# ------------------------------ tiling helpers ------------------------------

def _pick_tile(n, *, lane_block=False, cap=4096):
    """Largest row tile dividing n: prefer multiples of 128, keep >=2 grid steps."""
    limit = min(cap, n)
    if n >= 256:
        limit = min(limit, n // 2)        # >=2 grid steps (v7x megacore / pipelining)
    t = (limit // 128) * 128
    while t >= 128:
        if n % t == 0:
            return t
        t -= 128
    if lane_block:                        # tile sits on the lane dim of an output
        return n                          # must be 128-multiple or full extent
    t = (limit // 8) * 8
    while t >= 8:
        if n % t == 0:
            return t
        t -= 8
    return n


def _vmem_limit(block_shapes, scratch_shapes=(), dtype_bytes=4):
    blocks = sum(math.prod(s) for s in block_shapes) * dtype_bytes * 2  # double-buffer
    scratch = sum(math.prod(s) for s in scratch_shapes) * dtype_bytes
    need = blocks + scratch + (1 << 20)
    return int(min(48 << 20, max(need, 16 << 20)))


# ------------------------------ Pallas kernels ------------------------------

def _matmul_bias_kernel(x_ref, w_ref, b_ref, o_ref, *, activation):
    # o = act(x @ w + b)
    y = jnp.dot(x_ref[...], w_ref[...], preferred_element_type=jnp.float32)
    y = y + b_ref[...]
    if activation == "gelu":
        y = _gelu_exact(y)
    o_ref[...] = y.astype(o_ref.dtype)


def _conv_residual_gelu_kernel(x_ref, x1_ref, w_ref, b_ref, o_ref):
    # o = gelu( spectral_out + conv1x1(x) )   (conv1x1 == pointwise matmul)
    y = jnp.dot(x_ref[...], w_ref[...], preferred_element_type=jnp.float32)
    y = y + b_ref[...] + x1_ref[...]
    o_ref[...] = _gelu_exact(y).astype(o_ref.dtype)


def _head_kernel(x_ref, w1_ref, b1_ref, w2t_ref, b2_ref, o_ref, h_ref):
    # Fused projection head: out^T = w2^T @ gelu(x @ w1 + b1)^T + b2
    # h is kept in VMEM scratch; output is written lane-dense as [out_c, tn].
    h = jnp.dot(x_ref[...], w1_ref[...], preferred_element_type=jnp.float32)
    h_ref[...] = _gelu_exact(h + b1_ref[...])
    # einsum 'ok,nk->on' : contract K on both operands -> [out_c, tn]
    yt = lax.dot_general(
        w2t_ref[...], h_ref[...],
        dimension_numbers=(((1,), (1,)), ((), ())),
        preferred_element_type=jnp.float32,
    )
    o_ref[...] = (yt + b2_ref[...]).astype(o_ref.dtype)


# ------------------------------ Pallas wrappers ------------------------------

def pallas_linear(x2d, w, b, activation=None):
    """x2d: [N, Cin], w: [Cin, Cout], b: [Cout] -> [N, Cout]."""
    N, cin = x2d.shape
    cout = w.shape[1]
    tn = _pick_tile(N)
    kernel = partial(_matmul_bias_kernel, activation=activation)
    vmem = _vmem_limit([(tn, cin), (cin, cout), (1, cout), (tn, cout)])
    return pl.pallas_call(
        kernel,
        out_shape=jax.ShapeDtypeStruct((N, cout), x2d.dtype),
        grid=(N // tn,),
        in_specs=[
            pl.BlockSpec((tn, cin), lambda i: (i, 0)),
            pl.BlockSpec((cin, cout), lambda i: (0, 0)),
            pl.BlockSpec((1, cout), lambda i: (0, 0)),
        ],
        out_specs=pl.BlockSpec((tn, cout), lambda i: (i, 0)),
        compiler_params=pltpu.CompilerParams(
            dimension_semantics=("parallel",), vmem_limit_bytes=vmem),
    )(x2d, w, b.reshape(1, cout))


def pallas_conv_residual_gelu(x2d, x1_2d, w, b):
    """gelu(x1_2d + x2d @ w + b); all pixel-major [N, C] slabs."""
    N, cin = x2d.shape
    cout = w.shape[1]
    tn = _pick_tile(N)
    vmem = _vmem_limit([(tn, cin), (tn, cout), (cin, cout), (1, cout), (tn, cout)])
    return pl.pallas_call(
        _conv_residual_gelu_kernel,
        out_shape=jax.ShapeDtypeStruct((N, cout), x2d.dtype),
        grid=(N // tn,),
        in_specs=[
            pl.BlockSpec((tn, cin), lambda i: (i, 0)),
            pl.BlockSpec((tn, cout), lambda i: (i, 0)),
            pl.BlockSpec((cin, cout), lambda i: (0, 0)),
            pl.BlockSpec((1, cout), lambda i: (0, 0)),
        ],
        out_specs=pl.BlockSpec((tn, cout), lambda i: (i, 0)),
        compiler_params=pltpu.CompilerParams(
            dimension_semantics=("parallel",), vmem_limit_bytes=vmem),
    )(x2d, x1_2d, w, b.reshape(1, cout))


def pallas_head(x2d, w1, b1, w2, b2):
    """Fused fc1 -> gelu -> fc2.  Returns lane-dense [out_c, N] slab."""
    N, cin = x2d.shape
    hid = w1.shape[1]
    out_c = w2.shape[1]
    tn = _pick_tile(N, lane_block=True)
    w2t = w2.T                                   # [out_c, hid]
    vmem = _vmem_limit(
        [(tn, cin), (cin, hid), (1, hid), (out_c, hid), (out_c, 1), (out_c, tn)],
        scratch_shapes=[(tn, hid)])
    return pl.pallas_call(
        _head_kernel,
        out_shape=jax.ShapeDtypeStruct((out_c, N), x2d.dtype),
        grid=(N // tn,),
        in_specs=[
            pl.BlockSpec((tn, cin), lambda i: (i, 0)),
            pl.BlockSpec((cin, hid), lambda i: (0, 0)),
            pl.BlockSpec((1, hid), lambda i: (0, 0)),
            pl.BlockSpec((out_c, hid), lambda i: (0, 0)),
            pl.BlockSpec((out_c, 1), lambda i: (0, 0)),
        ],
        out_specs=pl.BlockSpec((out_c, tn), lambda i: (0, i)),
        scratch_shapes=[pltpu.VMEM((tn, hid), jnp.float32)],
        compiler_params=pltpu.CompilerParams(
            dimension_semantics=("parallel",), vmem_limit_bytes=vmem),
    )(x2d, w1, b1.reshape(1, hid), w2t, b2.reshape(out_c, 1))


# --------------------------- Spectral conv (NHWC, JAX) ----------------------

def spectral_conv2d_nhwc(x, w1, w2, modes1, modes2):
    # TODO(synk): rfft2/irfft2 have no Pallas TPU primitive; the FFTs run in XLA.
    b, nx, ny, _ = x.shape
    out_c = w1.shape[1]
    x_ft = jnp.fft.rfft2(x, axes=(1, 2))                      # [b, nx, ny//2+1, c]
    # Merge the two mode corners into a single complex einsum.
    x_corner = jnp.concatenate(
        [x_ft[:, :modes1, :modes2, :], x_ft[:, -modes1:, :modes2, :]], axis=1)
    w = jnp.concatenate([w1, w2], axis=2)                     # [ci, co, 2*m1, m2]
    corner = jnp.einsum("bxyi,ioxy->bxyo", x_corner, w)       # [b, 2*m1, m2, co]
    out_ft = jnp.zeros((b, nx, ny // 2 + 1, out_c), dtype=jnp.complex64)
    out_ft = out_ft.at[:, :modes1, :modes2, :].set(corner[:, :modes1])
    out_ft = out_ft.at[:, -modes1:, :modes2, :].set(corner[:, modes1:])
    return jnp.fft.irfft2(out_ft, s=(nx, ny), axes=(1, 2)).astype(x.dtype)


# ------------------------------ Model forward -------------------------------

def fno2d_piano_forward(params, u, grid, dt, *, modes1, modes2):
    """u: [B, T, NX, NY] (NCHW), grid: [B, 2, NX, NY], dt: [1]."""
    b, tw, nx, ny = u.shape
    u_cl = jnp.transpose(u, (0, 2, 3, 1))          # required by module semantics

    dx = grid[:, 0, 0, 1] - grid[:, 0, 0, 0]       # [b]
    dy = grid[:, 1, 1, 0] - grid[:, 1, 0, 0]       # [b]
    dx_c = jnp.broadcast_to(dx[:, None, None, None], (b, nx, ny, 1))
    dy_c = jnp.broadcast_to(dy[:, None, None, None], (b, nx, ny, 1))
    dt_c = jnp.broadcast_to(dt.reshape(-1, 1, 1, 1), (b, nx, ny, 1))
    x = jnp.concatenate([u_cl, dx_c, dy_c, dt_c], axis=-1)    # [b, nx, ny, Cin]

    N = b * nx * ny
    width = params["fc0_w"].shape[1]

    # fc0 lift (channels-last slab; reshape is free)
    x2d = pallas_linear(x.reshape(N, -1), params["fc0_w"], params["fc0_b"])
    x_nhwc = x2d.reshape(b, nx, ny, width)

    # FNO layers: x = gelu(spectral(x) + conv1x1(x)); dropout == identity (eval)
    for layer in params["layers"]:
        x1 = spectral_conv2d_nhwc(x_nhwc, layer["w1"], layer["w2"], modes1, modes2)
        y2d = pallas_conv_residual_gelu(
            x_nhwc.reshape(N, width), x1.reshape(N, width),
            layer["conv_w"], layer["conv_b"])
        x_nhwc = y2d.reshape(b, nx, ny, width)

    # Fused projection head: fc1 -> (dropout id) -> gelu -> fc2.
    out_t = pallas_head(x_nhwc.reshape(N, width),
                        params["fc1_w"], params["fc1_b"],
                        params["fc2_w"], params["fc2_b"])     # [out_c, N] lane-dense
    out_c = params["fc2_w"].shape[1]
    # Tiny leading-dim permutation only (minor dims untouched).
    return jnp.transpose(out_t.reshape(out_c, b, nx, ny), (1, 0, 2, 3))


# ------------------------------ Param init ----------------------------------

def init_params(key, in_channels, width, modes1, modes2, num_layers, out_channels):
    def linear(k, fan_in, fan_out):
        kw, kb = jax.random.split(k)
        bound = 1.0 / math.sqrt(fan_in)
        w = jax.random.uniform(kw, (fan_in, fan_out), jnp.float32, -bound, bound)
        b = jax.random.uniform(kb, (fan_out,), jnp.float32, -bound, bound)
        return w, b

    keys = jax.random.split(key, 3 + num_layers)
    fc0_w, fc0_b = linear(keys[0], in_channels, width)
    fc1_w, fc1_b = linear(keys[1], width, 128)
    fc2_w, fc2_b = linear(keys[2], 128, out_channels)

    layers = []
    scale = 1.0 / (width * width)
    for i in range(num_layers):
        k1, k2, k3, k4, kc = jax.random.split(keys[3 + i], 5)
        shp = (width, width, modes1, modes2)
        w1 = scale * (jax.random.uniform(k1, shp) + 1j * jax.random.uniform(k2, shp))
        w2 = scale * (jax.random.uniform(k3, shp) + 1j * jax.random.uniform(k4, shp))
        conv_w, conv_b = linear(kc, width, width)  # stored as [Cin, Cout]
        layers.append(dict(
            w1=w1.astype(jnp.complex64), w2=w2.astype(jnp.complex64),
            conv_w=conv_w, conv_b=conv_b))

    return dict(fc0_w=fc0_w, fc0_b=fc0_b, fc1_w=fc1_w, fc1_b=fc1_b,
                fc2_w=fc2_w, fc2_b=fc2_b, layers=layers)


# --------------------------------- Main --------------------------------------

if __name__ == "__main__":
    key = jax.random.PRNGKey(0)
    batch, time_window, nx, ny = 2, 20, 16, 16
    modes1 = modes2 = 6
    width = 24
    num_layers = 4
    time_future = 1
    in_channels = time_window + 3  # no eq_variables

    k_param, k_u = jax.random.split(key)
    params = init_params(k_param, in_channels, width, modes1, modes2,
                         num_layers, time_future)

    u = jax.random.normal(k_u, (batch, time_window, nx, ny), jnp.float32)

    # coordinate grid [b, 2, nx, ny]; channel 0 varies along last axis,
    # channel 1 varies along the nx axis (so dx/dy extracted in forward are > 0)
    xs = jnp.linspace(0.0, 1.0, nx)
    ys = jnp.linspace(0.0, 1.0, ny)
    gx, gy = jnp.meshgrid(xs, ys, indexing="ij")
    grid = jnp.broadcast_to(jnp.stack([gy, gx])[None], (batch, 2, nx, ny))
    grid = grid.astype(jnp.float32)

    dt = jnp.array([0.01], jnp.float32)

    fwd = jax.jit(partial(fno2d_piano_forward, modes1=modes1, modes2=modes2))
    out = fwd(params, u, grid, dt)
    out = jax.block_until_ready(out)
    assert out.shape == (batch, time_future, nx, ny), out.shape
    assert jnp.isfinite(out).all()
    print("KERNEL_OK")
</pallas_src>

<mosaic_0001>
module attributes {stable_mosaic.version = 11 : i64} {
  func.func @_matmul_bias_kernel(%arg0: i32, %arg1: memref<256x23xf32, #tpu.memory_space<vmem>>, %arg2: memref<23x24xf32, #tpu.memory_space<vmem>>, %arg3: memref<1x24xf32, #tpu.memory_space<vmem>>, %arg4: memref<256x24xf32, #tpu.memory_space<vmem>>) attributes {dimension_semantics = [#tpu.dimension_semantics<parallel>], iteration_bounds = array<i64: 2>, scalar_prefetch = 0 : i64, scratch_operands = 0 : i64, tpu.core_type = #tpu.core_type<tc>, window_params = [{transform_indices = @transform_0, window_bounds = array<i64: 256, 23>}, {pipeline_mode = #tpu.pipeline_mode<synchronous>, transform_indices = @transform_1, window_bounds = array<i64: 23, 24>}, {pipeline_mode = #tpu.pipeline_mode<synchronous>, transform_indices = @transform_2, window_bounds = array<i64: 1, 24>}, {transform_indices = @transform_3, window_bounds = array<i64: 256, 24>}]} {
    %c0 = arith.constant 0 : index
    %c0_0 = arith.constant 0 : index
    %0 = vector.load %arg1[%c0, %c0_0] : memref<256x23xf32, #tpu.memory_space<vmem>>, vector<256x23xf32>
    %c0_1 = arith.constant 0 : index
    %c0_2 = arith.constant 0 : index
    %1 = vector.load %arg2[%c0_1, %c0_2] : memref<23x24xf32, #tpu.memory_space<vmem>>, vector<23x24xf32>
    %cst = arith.constant dense<0.000000e+00> : vector<256x24xf32>
    %2 = tpu.matmul %0, %1, %cst {dimension_numbers = #tpu.dot_dimension_numbers<[1], [0], [0], [1], [0, 0, 1, 1], [], []>} : vector<256x23xf32>, vector<23x24xf32>, vector<256x24xf32> -> vector<256x24xf32>
    %c0_3 = arith.constant 0 : index
    %c0_4 = arith.constant 0 : index
    %3 = vector.load %arg3[%c0_3, %c0_4] : memref<1x24xf32, #tpu.memory_space<vmem>>, vector<1x24xf32>
    %4 = vector.broadcast %3 : vector<1x24xf32> to vector<256x24xf32>
    %5 = arith.addf %2, %4 : vector<256x24xf32>
    %c0_5 = arith.constant 0 : index
    %c0_6 = arith.constant 0 : index
    %6 = vector.load %arg4[%c0_5, %c0_6] : memref<256x24xf32, #tpu.memory_space<vmem>>, vector<256x24xf32>
    tpu.vector_store %arg4[%c0_5, %c0_6], %5 {strides = array<i32>} : memref<256x24xf32, #tpu.memory_space<vmem>>, vector<256x24xf32>,
    return
  }
  func.func @transform_0(%arg0: i32) -> (i32, i32) {
    %c0_i32 = arith.constant 0 : i32
    %c0_i32_0 = arith.constant 0 : i32
    return %arg0, %c0_i32 : i32, i32
  }
  func.func @transform_1(%arg0: i32) -> (i32, i32) {
    %c0_i32 = arith.constant 0 : i32
    %c0_i32_0 = arith.constant 0 : i32
    %c0_i32_1 = arith.constant 0 : i32
    return %c0_i32, %c0_i32_0 : i32, i32
  }
  func.func @transform_2(%arg0: i32) -> (i32, i32) {
    %c0_i32 = arith.constant 0 : i32
    %c0_i32_0 = arith.constant 0 : i32
    %c0_i32_1 = arith.constant 0 : i32
    return %c0_i32, %c0_i32_0 : i32, i32
  }
  func.func @transform_3(%arg0: i32) -> (i32, i32) {
    %c0_i32 = arith.constant 0 : i32
    %c0_i32_0 = arith.constant 0 : i32
    return %arg0, %c0_i32 : i32, i32
  }
}

module attributes {stable_mosaic.version = 11 : i64} {
  func.func @_conv_residual_gelu_kernel(%arg0: i32, %arg1: memref<256x24xf32, #tpu.memory_space<vmem>>, %arg2: memref<256x24xf32, #tpu.memory_space<vmem>>, %arg3: memref<24x24xf32, #tpu.memory_space<vmem>>, %arg4: memref<1x24xf32, #tpu.memory_space<vmem>>, %arg5: memref<256x24xf32, #tpu.memory_space<vmem>>) attributes {dimension_semantics = [#tpu.dimension_semantics<parallel>], iteration_bounds = array<i64: 2>, scalar_prefetch = 0 : i64, scratch_operands = 0 : i64, tpu.core_type = #tpu.core_type<tc>, window_params = [{transform_indices = @transform_0, window_bounds = array<i64: 256, 24>}, {transform_indices = @transform_1, window_bounds = array<i64: 256, 24>}, {pipeline_mode = #tpu.pipeline_mode<synchronous>, transform_indices = @transform_2, window_bounds = array<i64: 24, 24>}, {pipeline_mode = #tpu.pipeline_mode<synchronous>, transform_indices = @transform_3, window_bounds = array<i64: 1, 24>}, {transform_indices = @transform_4, window_bounds = array<i64: 256, 24>}]} {
    %c0 = arith.constant 0 : index
    %c0_0 = arith.constant 0 : index
    %0 = vector.load %arg1[%c0, %c0_0] : memref<256x24xf32, #tpu.memory_space<vmem>>, vector<256x24xf32>
    %c0_1 = arith.constant 0 : index
    %c0_2 = arith.constant 0 : index
    %1 = vector.load %arg3[%c0_1, %c0_2] : memref<24x24xf32, #tpu.memory_space<vmem>>, vector<24x24xf32>
    %cst = arith.constant dense<0.000000e+00> : vector<256x24xf32>
    %2 = tpu.matmul %0, %1, %cst {dimension_numbers = #tpu.dot_dimension_numbers<[1], [0], [0], [1], [0, 0, 1, 1], [], []>} : vector<256x24xf32>, vector<24x24xf32>, vector<256x24xf32> -> vector<256x24xf32>
    %c0_3 = arith.constant 0 : index
    %c0_4 = arith.constant 0 : index
    %3 = vector.load %arg4[%c0_3, %c0_4] : memref<1x24xf32, #tpu.memory_space<vmem>>, vector<1x24xf32>
    %4 = vector.broadcast %3 : vector<1x24xf32> to vector<256x24xf32>
    %5 = arith.addf %2, %4 : vector<256x24xf32>
    %c0_5 = arith.constant 0 : index
    %c0_6 = arith.constant 0 : index
    %6 = vector.load %arg2[%c0_5, %c0_6] : memref<256x24xf32, #tpu.memory_space<vmem>>, vector<256x24xf32>
    %7 = arith.addf %5, %6 : vector<256x24xf32>
    %cst_7 = arith.constant 5.000000e-01 : f32
    %8 = vector.broadcast %cst_7 : f32 to vector<256x24xf32>
    %9 = arith.mulf %8, %7 : vector<256x24xf32>
    %cst_8 = arith.constant 0.707106769 : f32
    %10 = vector.broadcast %cst_8 : f32 to vector<256x24xf32>
    %11 = arith.mulf %7, %10 : vector<256x24xf32>
    %12 = math.erf %11 : vector<256x24xf32>
    %cst_9 = arith.constant 1.000000e+00 : f32
    %13 = vector.broadcast %cst_9 : f32 to vector<256x24xf32>
    %14 = arith.addf %13, %12 : vector<256x24xf32>
    %15 = arith.mulf %9, %14 : vector<256x24xf32>
    %c0_10 = arith.constant 0 : index
    %c0_11 = arith.constant 0 : index
    %16 = vector.load %arg5[%c0_10, %c0_11] : memref<256x24xf32, #tpu.memory_space<vmem>>, vector<256x24xf32>
    tpu.vector_store %arg5[%c0_10, %c0_11], %15 {strides = array<i32>} : memref<256x24xf32, #tpu.memory_space<vmem>>, vector<256x24xf32>,
    return
  }
  func.func @transform_0(%arg0: i32) -> (i32, i32) {
    %c0_i32 = arith.constant 0 : i32
    %c0_i32_0 = arith.constant 0 : i32
    return %arg0, %c0_i32 : i32, i32
  }
  func.func @transform_1(%arg0: i32) -> (i32, i32) {
    %c0_i32 = arith.constant 0 : i32
    %c0_i32_0 = arith.constant 0 : i32
    return %arg0, %c0_i32 : i32, i32
  }
  func.func @transform_2(%arg0: i32) -> (i32, i32) {
    %c0_i32 = arith.constant 0 : i32
    %c0_i32_0 = arith.constant 0 : i32
    %c0_i32_1 = arith.constant 0 : i32
    return %c0_i32, %c0_i32_0 : i32, i32
  }
  func.func @transform_3(%arg0: i32) -> (i32, i32) {
    %c0_i32 = arith.constant 0 : i32
    %c0_i32_0 = arith.constant 0 : i32
    %c0_i32_1 = arith.constant 0 : i32
    return %c0_i32, %c0_i32_0 : i32, i32
  }
  func.func @transform_4(%arg0: i32) -> (i32, i32) {
    %c0_i32 = arith.constant 0 : i32
    %c0_i32_0 = arith.constant 0 : i32
    return %arg0, %c0_i32 : i32, i32
  }
}

module attributes {stable_mosaic.version = 11 : i64} {
  func.func @_head_kernel(%arg0: i32, %arg1: memref<256x24xf32, #tpu.memory_space<vmem>>, %arg2: memref<24x128xf32, #tpu.memory_space<vmem>>, %arg3: memref<1x128xf32, #tpu.memory_space<vmem>>, %arg4: memref<1x128xf32, #tpu.memory_space<vmem>>, %arg5: memref<1x1xf32, #tpu.memory_space<vmem>>, %arg6: memref<1x256xf32, #tpu.memory_space<vmem>>, %arg7: memref<256x128xf32, #tpu.memory_space<vmem>>) attributes {dimension_semantics = [#tpu.dimension_semantics<parallel>], iteration_bounds = array<i64: 2>, scalar_prefetch = 0 : i64, scratch_operands = 1 : i64, tpu.core_type = #tpu.core_type<tc>, window_params = [{transform_indices = @transform_0, window_bounds = array<i64: 256, 24>}, {pipeline_mode = #tpu.pipeline_mode<synchronous>, transform_indices = @transform_1, window_bounds = array<i64: 24, 128>}, {pipeline_mode = #tpu.pipeline_mode<synchronous>, transform_indices = @transform_2, window_bounds = array<i64: 1, 128>}, {pipeline_mode = #tpu.pipeline_mode<synchronous>, transform_indices = @transform_3, window_bounds = array<i64: 1, 128>}, {pipeline_mode = #tpu.pipeline_mode<synchronous>, transform_indices = @transform_4, window_bounds = array<i64: 1, 1>}, {transform_indices = @transform_5, window_bounds = array<i64: 1, 256>}]} {
    %c0 = arith.constant 0 : index
    %c0_0 = arith.constant 0 : index
    %0 = vector.load %arg1[%c0, %c0_0] : memref<256x24xf32, #tpu.memory_space<vmem>>, vector<256x24xf32>
    %c0_1 = arith.constant 0 : index
    %c0_2 = arith.constant 0 : index
    %1 = vector.load %arg2[%c0_1, %c0_2] : memref<24x128xf32, #tpu.memory_space<vmem>>, vector<24x128xf32>
    %cst = arith.constant dense<0.000000e+00> : vector<256x128xf32>
    %2 = tpu.matmul %0, %1, %cst {dimension_numbers = #tpu.dot_dimension_numbers<[1], [0], [0], [1], [0, 0, 1, 1], [], []>} : vector<256x24xf32>, vector<24x128xf32>, vector<256x128xf32> -> vector<256x128xf32>
    %c0_3 = arith.constant 0 : index
    %c0_4 = arith.constant 0 : index
    %3 = vector.load %arg3[%c0_3, %c0_4] : memref<1x128xf32, #tpu.memory_space<vmem>>, vector<1x128xf32>
    %4 = vector.broadcast %3 : vector<1x128xf32> to vector<256x128xf32>
    %5 = arith.addf %2, %4 : vector<256x128xf32>
    %cst_5 = arith.constant 5.000000e-01 : f32
    %6 = vector.broadcast %cst_5 : f32 to vector<256x128xf32>
    %7 = arith.mulf %6, %5 : vector<256x128xf32>
    %cst_6 = arith.constant 0.707106769 : f32
    %8 = vector.broadcast %cst_6 : f32 to vector<256x128xf32>
    %9 = arith.mulf %5, %8 : vector<256x128xf32>
    %10 = math.erf %9 : vector<256x128xf32>
    %cst_7 = arith.constant 1.000000e+00 : f32
    %11 = vector.broadcast %cst_7 : f32 to vector<256x128xf32>
    %12 = arith.addf %11, %10 : vector<256x128xf32>
    %13 = arith.mulf %7, %12 : vector<256x128xf32>
    %c0_8 = arith.constant 0 : index
    %c0_9 = arith.constant 0 : index
    %14 = vector.load %arg7[%c0_8, %c0_9] : memref<256x128xf32, #tpu.memory_space<vmem>>, vector<256x128xf32>
    tpu.vector_store %arg7[%c0_8, %c0_9], %13 {strides = array<i32>} : memref<256x128xf32, #tpu.memory_space<vmem>>, vector<256x128xf32>,
    %c0_10 = arith.constant 0 : index
    %c0_11 = arith.constant 0 : index
    %15 = vector.load %arg4[%c0_10, %c0_11] : memref<1x128xf32, #tpu.memory_space<vmem>>, vector<1x128xf32>
    %c0_12 = arith.constant 0 : index
    %c0_13 = arith.constant 0 : index
    %16 = vector.load %arg7[%c0_12, %c0_13] : memref<256x128xf32, #tpu.memory_space<vmem>>, vector<256x128xf32>
    %cst_14 = arith.constant dense<0.000000e+00> : vector<1x256xf32>
    %17 = tpu.matmul %15, %16, %cst_14 {dimension_numbers = #tpu.dot_dimension_numbers<[1], [1], [0], [0], [0, 0, 1, 0], [], []>} : vector<1x128xf32>, vector<256x128xf32>, vector<1x256xf32> -> vector<1x256xf32>
    %c0_15 = arith.constant 0 : index
    %c0_16 = arith.constant 0 : index
    %18 = vector.load %arg5[%c0_15, %c0_16] : memref<1x1xf32, #tpu.memory_space<vmem>>, vector<1x1xf32>
    %19 = vector.broadcast %18 : vector<1x1xf32> to vector<1x256xf32>
    %20 = arith.addf %17, %19 : vector<1x256xf32>
    %c0_17 = arith.constant 0 : index
    %c0_18 = arith.constant 0 : index
    %21 = vector.load %arg6[%c0_17, %c0_18] : memref<1x256xf32, #tpu.memory_space<vmem>>, vector<1x256xf32>
    tpu.vector_store %arg6[%c0_17, %c0_18], %20 {strides = array<i32>} : memref<1x256xf32, #tpu.memory_space<vmem>>, vector<1x256xf32>,
    return
  }
  func.func @transform_0(%arg0: i32) -> (i32, i32) {
    %c0_i32 = arith.constant 0 : i32
    %c0_i32_0 = arith.constant 0 : i32
    return %arg0, %c0_i32 : i32, i32
  }
  func.func @transform_1(%arg0: i32) -> (i32, i32) {
    %c0_i32 = arith.constant 0 : i32
    %c0_i32_0 = arith.constant 0 : i32
    %c0_i32_1 = arith.constant 0 : i32
    return %c0_i32, %c0_i32_0 : i32, i32
  }
  func.func @transform_2(%arg0: i32) -> (i32, i32) {
    %c0_i32 = arith.constant 0 : i32
    %c0_i32_0 = arith.constant 0 : i32
    %c0_i32_1 = arith.constant 0 : i32
    return %c0_i32, %c0_i32_0 : i32, i32
  }
  func.func @transform_3(%arg0: i32) -> (i32, i32) {
    %c0_i32 = arith.constant 0 : i32
    %c0_i32_0 = arith.constant 0 : i32
    %c0_i32_1 = arith.constant 0 : i32
    return %c0_i32, %c0_i32_0 : i32, i32
  }
  func.func @transform_4(%arg0: i32) -> (i32, i32) {
    %c0_i32 = arith.constant 0 : i32
    %c0_i32_0 = arith.constant 0 : i32
    %c0_i32_1 = arith.constant 0 : i32
    return %c0_i32, %c0_i32_0 : i32, i32
  }
  func.func @transform_5(%arg0: i32) -> (i32, i32) {
    %c0_i32 = arith.constant 0 : i32
    %c0_i32_0 = arith.constant 0 : i32
    return %c0_i32, %arg0 : i32, i32
  }
}

</mosaic_0001>

<llo_original>
// kernel: fno2d_piano_forward.6
$region0: #{fno2d_piano_forward.6}
  #allocation0 [shape = 'u32[]', space=smem, size = 0x4, offset = 0x4, fixed_abs, tag = 'smem constant byte address 0x4 - core index']
  #allocation1 [shape = 'u32[144,128]{1,0:T(1,128)}', space=vmem, size = 0x12000, scoped, tag = 'internal scratch']
  %s0 = inlined_call_operand.vmem [shape: f32[512,23], index: 0, kind: input, shape index: {}]
  %s1 = inlined_call_operand.vmem [shape: f32[23,24], index: 1, kind: input, shape index: {}]
  %s2 = inlined_call_operand.vmem [shape: f32[1,24], index: 2, kind: input, shape index: {}]
  %s3 = inlined_call_operand.vmem [shape: f32[512,24], index: 3, kind: output, shape index: {}]
  %s4 = sld [smem:[#allocation0]]
  $region45: #{fno2d_piano_forward.6} parent=0
    _
  %s6 = ssub.s32 1, %s4
  %s7 = scalar_select 0, %s6, %s4
  loop: start=0, step=1, limit=4
  $region2: #{fno2d_piano_forward.6} parent=0 // loop_pre_header
    _
  $region3: #{fno2d_piano_forward.6} parent=0 // loop_header
    %s9 = sphi 0, %s13
    %p10 = scmp.ge.s32.totalorder %s9, 4
    %s19 = sphi 0, %s21
    %s22 = sphi 0, %s19
    %s23 = sphi 0, %s22
    %s39 = sphi 0, %s23
    %s43 = sphi 0, %s43
    %s45 = sphi 0, %s43
    %s46 = sphi 0, %s45
    %s60 = sphi 0, %s46
    %s64 = sphi 0, %s64
    %s66 = sphi 0, %s64
    %s67 = sphi 0, %s66
    %s81 = sphi 0, %s67
    %s87 = sphi 0, %s89
    %s90 = sphi 0, %s87
    %s91 = sphi 0, %s90
    %s107 = sphi 0, %s91
  $region4: #{fno2d_piano_forward.6} parent=0 // loop_header_branch
    %12 = sbr.rel (%p10) target = $region8
  $region5: #{fno2d_piano_forward.6} parent=0 // loop_body
    %s14 = ssub.s32 %s9, 1
    %s15 = ssub.s32 %s9, 2
    %s16 = sadd.s32 %s9, 1
    %s17 = ssub.s32 %s9, %s16
    %p18 = scmp.eq.s32.totalorder %s17, 0
    %s20 = sadd.s32 %s19, 1
    %s21 = scalar_select %p18, %s19, %s20
    %p24 = pneg %p18
    %p25 = scmp.eq.s32.totalorder %s9, 1
    %p26 = por %p24, %p25
    %p27 = scmp.ne.s32.totalorder %s19, %s22
    %p28 = scmp.eq.s32.totalorder %s9, 0
    %p29 = por %p27, %p28
    %p30 = scmp.ne.s32.totalorder %s19, %s22
    %p31 = scmp.eq.s32.totalorder %s14, 1
    %p32 = por %p30, %p31
    %p33 = scmp.ne.s32.totalorder %s22, %s23
    %p34 = scmp.eq.s32.totalorder %s14, 0
    %p35 = por %p33, %p34
    %p36 = scmp.ne.s32.totalorder %s22, %s23
    %p37 = scmp.eq.s32.totalorder %s15, 1
    %p38 = por %p36, %p37
    %p40 = scmp.ne.s32.totalorder %s23, %s39
    %p41 = scmp.eq.s32.totalorder %s15, 0
    %p42 = por %p40, %p41
    %s44 = sadd.s32 %s43, 1
    %p47 = scmp.eq.s32.totalorder %s9, 1
    %p48 = scmp.ne.s32.totalorder %s43, %s45
    %p49 = scmp.eq.s32.totalorder %s9, 0
    %p50 = por %p48, %p49
    %p51 = scmp.ne.s32.totalorder %s43, %s45
    %p52 = scmp.eq.s32.totalorder %s14, 1
    %p53 = por %p51, %p52
    %p54 = scmp.ne.s32.totalorder %s45, %s46
    %p55 = scmp.eq.s32.totalorder %s14, 0
    %p56 = por %p54, %p55
    %p57 = scmp.ne.s32.totalorder %s45, %s46
    %p58 = scmp.eq.s32.totalorder %s15, 1
    %p59 = por %p57, %p58
    %p61 = scmp.ne.s32.totalorder %s46, %s60
    %p62 = scmp.eq.s32.totalorder %s15, 0
    %p63 = por %p61, %p62
    %s65 = sadd.s32 %s64, 1
    %p68 = scmp.eq.s32.totalorder %s9, 1
    %p69 = scmp.ne.s32.totalorder %s64, %s66
    %p70 = scmp.eq.s32.totalorder %s9, 0
    %p71 = por %p69, %p70
    %p72 = scmp.ne.s32.totalorder %s64, %s66
    %p73 = scmp.eq.s32.totalorder %s14, 1
    %p74 = por %p72, %p73
    %p75 = scmp.ne.s32.totalorder %s66, %s67
    %p76 = scmp.eq.s32.totalorder %s14, 0
    %p77 = por %p75, %p76
    %p78 = scmp.ne.s32.totalorder %s66, %s67
    %p79 = scmp.eq.s32.totalorder %s15, 1
    %p80 = por %p78, %p79
    %p82 = scmp.ne.s32.totalorder %s67, %s81
    %p83 = scmp.eq.s32.totalorder %s15, 0
    %p84 = por %p82, %p83
    %s85 = ssub.s32 %s9, %s16
    %p86 = scmp.eq.s32.totalorder %s85, 0
    %s88 = sadd.s32 %s87, 1
    %s89 = scalar_select %p86, %s87, %s88
    %p92 = pneg %p86
    %p93 = scmp.eq.s32.totalorder %s9, 1
    %p94 = por %p92, %p93
    %p95 = scmp.ne.s32.totalorder %s87, %s90
    %p96 = scmp.eq.s32.totalorder %s9, 0
    %p97 = por %p95, %p96
    %p98 = scmp.ne.s32.totalorder %s87, %s90
    %p99 = scmp.eq.s32.totalorder %s14, 1
    %p100 = por %p98, %p99
    %p101 = scmp.ne.s32.totalorder %s90, %s91
    %p102 = scmp.eq.s32.totalorder %s14, 0
    %p103 = por %p101, %p102
    %p104 = scmp.ne.s32.totalorder %s90, %s91
    %p105 = scmp.eq.s32.totalorder %s15, 1
    %p106 = por %p104, %p105
    %p108 = scmp.ne.s32.totalorder %s91, %s107
    %p109 = scmp.eq.s32.totalorder %s15, 0
    %p110 = por %p108, %p109
    %p111 = scmp.le.s32.totalorder 1, %s9
    %p112 = scmp.lt.s32.totalorder %s9, 3
    %p113 = pnand %p111, %p112
    %p114 = pneg %p113
    // Predicated region
    $region9: #{fno2d_piano_forward.6} parent=5 // pred_check
      _
    $region10: #{fno2d_piano_forward.6} parent=5 // pred_check_branch
      %116 = sbr.rel (%p113) target = $region12
    $region11: #{fno2d_piano_forward.6} parent=5 // pred_region
      %s117 = ssub.s32 %s9, 1
      // Predicated region
      $region13: #{fno2d_piano_forward.6} parent=11 // pred_check
        %p118 = pneg %p56
      $region14: #{fno2d_piano_forward.6} parent=11 // pred_check_branch
        %120 = sbr.rel (%p118) target = $region16
      $region15: #{fno2d_piano_forward.6} parent=11 // pred_region
        _
      $region16: #{fno2d_piano_forward.6} parent=11 // pred_fallthru
        _
      // Predicated region
      $region17: #{fno2d_piano_forward.6} parent=11 // pred_check
        %p121 = pneg %p77
      $region18: #{fno2d_piano_forward.6} parent=11 // pred_check_branch
        %123 = sbr.rel (%p121) target = $region20
      $region19: #{fno2d_piano_forward.6} parent=11 // pred_region
        _
      $region20: #{fno2d_piano_forward.6} parent=11 // pred_fallthru
        _
    $region12: #{fno2d_piano_forward.6} parent=5 // pred_fallthru
      _
    %p124 = scmp.lt.s32.totalorder %s9, 2
    // Predicated region
    $region21: #{fno2d_piano_forward.6} parent=5 // pred_check
      %p125 = pneg %p124
    $region22: #{fno2d_piano_forward.6} parent=5 // pred_check_branch
      %127 = sbr.rel (%p125) target = $region24
    $region23: #{fno2d_piano_forward.6} parent=5 // pred_region
      // Predicated region
      $region25: #{fno2d_piano_forward.6} parent=23 // pred_check
        %p128 = pneg %p29
      $region26: #{fno2d_piano_forward.6} parent=23 // pred_check_branch
        %130 = sbr.rel (%p128) target = $region28
      $region27: #{fno2d_piano_forward.6} parent=23 // pred_region
        %s131 = smul.u32 32, %s9
        %p132 = scmp.lt.s32.totalorder %s131, 63
        %s133 = scalar_select %p132, %s131, 63
        %s134 = smul.addr %s133, 8
        %s135 = scalar_lea.vmem %s0, %s134
        %s136 = smul.u32 32, %s9
      $region28: #{fno2d_piano_forward.6} parent=23 // pred_fallthru
        _
    $region24: #{fno2d_piano_forward.6} parent=5 // pred_fallthru
      _
    %p137 = scmp.le.s32.totalorder 1, %s9
    %p138 = scmp.lt.s32.totalorder %s9, 3
    %p139 = pnand %p137, %p138
    %p140 = pneg %p139
    // Predicated region
    $region29: #{fno2d_piano_forward.6} parent=5 // pred_check
      _
    $region30: #{fno2d_piano_forward.6} parent=5 // pred_check_branch
      %142 = sbr.rel (%p139) target = $region32
    $region31: #{fno2d_piano_forward.6} parent=5 // pred_region
      %s143 = ssub.s32 %s9, 1
      %s144 = smul.u32 32, %s14
      %p145 = scmp.lt.s32.totalorder %s144, 63
      %s146 = scalar_select %p145, %s144, 63
      %s147 = smul.addr %s146, 8
      %s148 = scalar_lea.vmem %s0, %s147
      %p149 = pneg %p35
      %p150 = pneg %p32
      %p151 = pneg %p56
      %p152 = pneg %p53
      %p153 = pneg %p77
      %p154 = pneg %p74
      %p155 = pneg %p103
      %p156 = pneg %p100
      %s157 = smul.u32 32, %s14
      %p158 = scmp.lt.s32.totalorder %s157, 63
      %s159 = scalar_select %p158, %s157, 63
      %s160 = smul.addr %s159, 8
      %s161 = scalar_lea.vmem %s3, %s160
      %s162 = smul.u32 32, %s14
      %p163 = scmp.lt.s32.totalorder %s162, 63
      %s164 = scalar_select %p163, %s162, 63
      %s165 = smul.addr %s164, 8
      %s166 = scalar_lea.vmem %s0, %s165
      %s167 = smul.u32 32, %s14
      %s168 = smul.u32 32, %s14
      %p169 = scmp.lt.s32.totalorder %s168, 63
      %s170 = scalar_select %p169, %s168, 63
      %s171 = smul.addr %s170, 8
      %s172 = scalar_lea.vmem %s3, %s171
      %s173 = smul.u32 32, %s14
      %v174 = vld [vmem:[%s166] sm:$0xff]
      %v175 = vld [vmem:[%s166 + $0x8] sm:$0xff]
      %v176 = vld [vmem:[%s166 + $0x10] sm:$0xff]
      %v177 = vld [vmem:[%s166 + $0x18] sm:$0xff]
      %v178 = vld [vmem:[%s166 + $0x20] sm:$0xff]
      %v179 = vld [vmem:[%s166 + $0x28] sm:$0xff]
      %v180 = vld [vmem:[%s166 + $0x30] sm:$0xff]
      %v181 = vld [vmem:[%s166 + $0x38] sm:$0xff]
      %v182 = vld [vmem:[%s166 + $0x40] sm:$0xff]
      %v183 = vld [vmem:[%s166 + $0x48] sm:$0xff]
      %v184 = vld [vmem:[%s166 + $0x50] sm:$0xff]
      %v185 = vld [vmem:[%s166 + $0x58] sm:$0xff]
      %v186 = vld [vmem:[%s166 + $0x60] sm:$0xff]
      %v187 = vld [vmem:[%s166 + $0x68] sm:$0xff]
      %v188 = vld [vmem:[%s166 + $0x70] sm:$0xff]
      %v189 = vld [vmem:[%s166 + $0x78] sm:$0xff]
      %v190 = vld [vmem:[%s166 + $0x80] sm:$0xff]
      %v191 = vld [vmem:[%s166 + $0x88] sm:$0xff]
      %v192 = vld [vmem:[%s166 + $0x90] sm:$0xff]
      %v193 = vld [vmem:[%s166 + $0x98] sm:$0xff]
      %v194 = vld [vmem:[%s166 + $0xa0] sm:$0xff]
      %v195 = vld [vmem:[%s166 + $0xa8] sm:$0xff]
      %v196 = vld [vmem:[%s166 + $0xb0] sm:$0xff]
      %v197 = vld [vmem:[%s166 + $0xb8] sm:$0xff]
      %v198 = vld [vmem:[%s166 + $0xc0] sm:$0xff]
      %v199 = vld [vmem:[%s166 + $0xc8] sm:$0xff]
      %v200 = vld [vmem:[%s166 + $0xd0] sm:$0xff]
      %v201 = vld [vmem:[%s166 + $0xd8] sm:$0xff]
      %v202 = vld [vmem:[%s166 + $0xe0] sm:$0xff]
      %v203 = vld [vmem:[%s166 + $0xe8] sm:$0xff]
      %v204 = vld [vmem:[%s166 + $0xf0] sm:$0xff]
      %v205 = vld [vmem:[%s166 + $0xf8] sm:$0xff]
      %v206 = vld [vmem:[%s1] sm:$0xff]
      %v207 = vld [vmem:[%s1 + $0x8] sm:$0xff]
      %v208 = vld [vmem:[%s1 + $0x10] sm:$0x7f]
      %v209 = vld [vmem:[%s2] sm:$0x1]
      %v211 = vlaneseq
      %v212 = vshrl.u32 %v211, 7
      %v213 = vsub.s32 0, %v212
      %v214 = vrot.slane %v209, %v213
      %vm216 = vcmask 187392
      %v218 = vsel %vm216, %v174, 0
      %v221 = vsel %vm216, %v175, 0
      %v224 = vsel %vm216, %v176, 0
      %v227 = vsel %vm216, %v177, 0
      %v230 = vsel %vm216, %v178, 0
      %v233 = vsel %vm216, %v179, 0
      %v236 = vsel %vm216, %v180, 0
      %v239 = vsel %vm216, %v181, 0
      %v242 = vsel %vm216, %v182, 0
      %v245 = vsel %vm216, %v183, 0
      %v248 = vsel %vm216, %v184, 0
      %v251 = vsel %vm216, %v185, 0
      %v254 = vsel %vm216, %v186, 0
      %v257 = vsel %vm216, %v187, 0
      %v260 = vsel %vm216, %v188, 0
      %v263 = vsel %vm216, %v189, 0
      %v266 = vsel %vm216, %v190, 0
      %v269 = vsel %vm216, %v191, 0
      %v272 = vsel %vm216, %v192, 0
      %v275 = vsel %vm216, %v193, 0
      %v278 = vsel %vm216, %v194, 0
      %v281 = vsel %vm216, %v195, 0
      %v284 = vsel %vm216, %v196, 0
      %v287 = vsel %vm216, %v197, 0
      %v290 = vsel %vm216, %v198, 0
      %v293 = vsel %vm216, %v199, 0
      %v296 = vsel %vm216, %v200, 0
      %v299 = vsel %vm216, %v201, 0
      %v302 = vsel %vm216, %v202, 0
      %v305 = vsel %vm216, %v203, 0
      %v308 = vsel %vm216, %v204, 0
      %v311 = vsel %vm216, %v205, 0
      %vm313 = vcmask 1046528
      %v315 = vsel %vm313, %v208, 0
      %317 = vmatprep.subr.mxu0 0.0
      %318 = vmatpush1.msra.mxu0 %v206
      %319 = vmatprep.subr.mxu0 0.0
      %320 = vmatpush1.msra.mxu0 %v207
      %321 = vmatprep.subr.mxu0 0.0
      %322 = vmatpush1.msra.mxu0 %v315
      %323 = vmatprep.subr.mxu0 0.0
      %324 = vmatpush1.msra.mxu0 0.0
      %325 = vmatprep.subr.mxu0 0.0
      %326 = vmatpush1.msra.mxu0 0.0
      %327 = vmatprep.subr.mxu0 0.0
      %328 = vmatpush1.msra.mxu0 0.0
      %329 = vmatprep.subr.mxu0 0.0
      %330 = vmatpush1.msra.mxu0 0.0
      %331 = vmatprep.subr.mxu0 0.0
      %332 = vmatpush1.msra.mxu0 0.0
      %333 = vmatprep.subr.mxu0 0.0
      %334 = vmatpush1.msra.mxu0 0.0
      %335 = vmatprep.subr.mxu0 0.0
      %336 = vmatpush1.msra.mxu0 0.0
      %337 = vmatprep.subr.mxu0 0.0
      %338 = vmatpush1.msra.mxu0 0.0
      %339 = vmatprep.subr.mxu0 0.0
      %340 = vmatpush1.msra.mxu0 0.0
      %341 = vmatprep.subr.mxu0 0.0
      %342 = vmatpush1.msra.mxu0 0.0
      %343 = vmatprep.subr.mxu0 0.0
      %344 = vmatpush1.msra.mxu0 0.0
      %345 = vmatprep.subr.mxu0 0.0
      %346 = vmatpush1.msra.mxu0 0.0
      %347 = vmatprep.subr.mxu0 0.0
      %348 = vmatpush1.msra.mxu0 0.0
      %349 = vmatprep.subr.mxu0 0.0
      %350 = vmatpush1.msra.mxu0 0.0
      %351 = vmatprep.subr.mxu0 0.0
      %352 = vmatpush1.msra.mxu0 0.0
      %353 = vmatprep.subr.mxu0 0.0
      %354 = vmatpush1.msra.mxu0 0.0
      %355 = vmatprep.subr.mxu0 0.0
      %356 = vmatpush1.msra.mxu0 0.0
      %357 = vmatprep.subr.mxu0 0.0
      %358 = vmatpush1.msra.mxu0 0.0
      %359 = vmatprep.subr.mxu0 0.0
      %360 = vmatpush1.msra.mxu0 0.0
      %361 = vmatprep.subr.mxu0 0.0
      %362 = vmatpush1.msra.mxu0 0.0
      %363 = vmatprep.subr.mxu0 0.0
      %364 = vmatpush1.msra.mxu0 0.0
      %365 = vmatprep.subr.mxu0 0.0
      %366 = vmatpush1.msra.mxu0 0.0
      %367 = vmatprep.subr.mxu0 0.0
      %368 = vmatpush1.msra.mxu0 0.0
      %369 = vmatprep.subr.mxu0 0.0
      %370 = vmatpush1.msra.mxu0 0.0
      %371 = vmatprep.subr.mxu0 0.0
      %372 = vmatpush1.msra.mxu0 0.0
      %373 = vmatprep.subr.mxu0 0.0
      %374 = vmatpush1.msra.mxu0 0.0
      %375 = vmatprep.subr.mxu0 0.0
      %376 = vmatpush1.msra.mxu0 0.0
      %377 = vmatprep.subr.mxu0 0.0
      %378 = vmatpush1.msra.mxu0 0.0
      %379 = vmatprep.subr.mxu0 0.0
      %380 = vmatpush1.msra.mxu0 0.0
      %381 = vmatprep.mubr.f32.mxu0 0.0
      %382 = vmatmul.mubr.f32.gmra.mrb[0].mxu0 %v218
      %v383 = vpop.f32.mrb[0].mxu0
      %v384 = vadd.f32 %v214, %v383
      %v385 = vpop.f32.mrb[0].mxu0
      %386 = vmatprep.mubr.f32.mxu0 0.0
      %387 = vmatmul.mubr.f32.gmra.mrb[0].mxu0 %v221
      %v388 = vpop.f32.mrb[0].mxu0
      %v389 = vadd.f32 %v214, %v388
      %v390 = vpop.f32.mrb[0].mxu0
      %391 = vmatprep.mubr.f32.mxu0 0.0
      %392 = vmatmul.mubr.f32.gmra.mrb[0].mxu0 %v224
      %v393 = vpop.f32.mrb[0].mxu0
      %v394 = vadd.f32 %v214, %v393
      %v395 = vpop.f32.mrb[0].mxu0
      %396 = vmatprep.mubr.f32.mxu0 0.0
      %397 = vmatmul.mubr.f32.gmra.mrb[0].mxu0 %v227
      %v398 = vpop.f32.mrb[0].mxu0
      %v399 = vadd.f32 %v214, %v398
      %v400 = vpop.f32.mrb[0].mxu0
      %401 = vmatprep.mubr.f32.mxu0 0.0
      %402 = vmatmul.mubr.f32.gmra.mrb[0].mxu0 %v230
      %v403 = vpop.f32.mrb[0].mxu0
      %v404 = vadd.f32 %v214, %v403
      %v405 = vpop.f32.mrb[0].mxu0
      %406 = vmatprep.mubr.f32.mxu0 0.0
      %407 = vmatmul.mubr.f32.gmra.mrb[0].mxu0 %v233
      %v408 = vpop.f32.mrb[0].mxu0
      %v409 = vadd.f32 %v214, %v408
      %v410 = vpop.f32.mrb[0].mxu0
      %411 = vmatprep.mubr.f32.mxu0 0.0
      %412 = vmatmul.mubr.f32.gmra.mrb[0].mxu0 %v236
      %v413 = vpop.f32.mrb[0].mxu0
      %v414 = vadd.f32 %v214, %v413
      %v415 = vpop.f32.mrb[0].mxu0
      %416 = vmatprep.mubr.f32.mxu0 0.0
      %417 = vmatmul.mubr.f32.gmra.mrb[0].mxu0 %v239
      %v418 = vpop.f32.mrb[0].mxu0
      %v419 = vadd.f32 %v214, %v418
      %v420 = vpop.f32.mrb[0].mxu0
      %421 = vmatprep.mubr.f32.mxu0 0.0
      %422 = vmatmul.mubr.f32.gmra.mrb[0].mxu0 %v242
      %v423 = vpop.f32.mrb[0].mxu0
      %v424 = vadd.f32 %v214, %v423
      %v425 = vpop.f32.mrb[0].mxu0
      %426 = vmatprep.mubr.f32.mxu0 0.0
      %427 = vmatmul.mubr.f32.gmra.mrb[0].mxu0 %v245
      %v428 = vpop.f32.mrb[0].mxu0
      %v429 = vadd.f32 %v214, %v428
      %v430 = vpop.f32.mrb[0].mxu0
      %431 = vmatprep.mubr.f32.mxu0 0.0
      %432 = vmatmul.mubr.f32.gmra.mrb[0].mxu0 %v248
      %v433 = vpop.f32.mrb[0].mxu0
      %v434 = vadd.f32 %v214, %v433
      %v435 = vpop.f32.mrb[0].mxu0
      %436 = vmatprep.mubr.f32.mxu0 0.0
      %437 = vmatmul.mubr.f32.gmra.mrb[0].mxu0 %v251
      %v438 = vpop.f32.mrb[0].mxu0
      %v439 = vadd.f32 %v214, %v438
      %v440 = vpop.f32.mrb[0].mxu0
      %441 = vmatprep.mubr.f32.mxu0 0.0
      %442 = vmatmul.mubr.f32.gmra.mrb[0].mxu0 %v254
      %v443 = vpop.f32.mrb[0].mxu0
      %v444 = vadd.f32 %v214, %v443
      %v445 = vpop.f32.mrb[0].mxu0
      %446 = vmatprep.mubr.f32.mxu0 0.0
      %447 = vmatmul.mubr.f32.gmra.mrb[0].mxu0 %v257
      %v448 = vpop.f32.mrb[0].mxu0
      %v449 = vadd.f32 %v214, %v448
      %v450 = vpop.f32.mrb[0].mxu0
      %451 = vmatprep.mubr.f32.mxu0 0.0
      %452 = vmatmul.mubr.f32.gmra.mrb[0].mxu0 %v260
      %v453 = vpop.f32.mrb[0].mxu0
      %v454 = vadd.f32 %v214, %v453
      %v455 = vpop.f32.mrb[0].mxu0
      %456 = vmatprep.mubr.f32.mxu0 0.0
      %457 = vmatmul.mubr.f32.gmra.mrb[0].mxu0 %v263
      %v458 = vpop.f32.mrb[0].mxu0
      %v459 = vadd.f32 %v214, %v458
      %v460 = vpop.f32.mrb[0].mxu0
      %461 = vmatprep.mubr.f32.mxu0 0.0
      %462 = vmatmul.mubr.f32.gmra.mrb[0].mxu0 %v266
      %v463 = vpop.f32.mrb[0].mxu0
      %v464 = vadd.f32 %v214, %v463
      %v465 = vpop.f32.mrb[0].mxu0
      %466 = vmatprep.mubr.f32.mxu0 0.0
      %467 = vmatmul.mubr.f32.gmra.mrb[0].mxu0 %v269
      %v468 = vpop.f32.mrb[0].mxu0
      %v469 = vadd.f32 %v214, %v468
      %v470 = vpop.f32.mrb[0].mxu0
      %471 = vmatprep.mubr.f32.mxu0 0.0
      %472 = vmatmul.mubr.f32.gmra.mrb[0].mxu0 %v272
      %v473 = vpop.f32.mrb[0].mxu0
      %v474 = vadd.f32 %v214, %v473
      %v475 = vpop.f32.mrb[0].mxu0
      %476 = vmatprep.mubr.f32.mxu0 0.0
      %477 = vmatmul.mubr.f32.gmra.mrb[0].mxu0 %v275
      %v478 = vpop.f32.mrb[0].mxu0
      %v479 = vadd.f32 %v214, %v478
      %v480 = vpop.f32.mrb[0].mxu0
      %481 = vmatprep.mubr.f32.mxu0 0.0
      %482 = vmatmul.mubr.f32.gmra.mrb[0].mxu0 %v278
      %v483 = vpop.f32.mrb[0].mxu0
      %v484 = vadd.f32 %v214, %v483
      %v485 = vpop.f32.mrb[0].mxu0
      %486 = vmatprep.mubr.f32.mxu0 0.0
      %487 = vmatmul.mubr.f32.gmra.mrb[0].mxu0 %v281
      %v488 = vpop.f32.mrb[0].mxu0
      %v489 = vadd.f32 %v214, %v488
      %v490 = vpop.f32.mrb[0].mxu0
      %491 = vmatprep.mubr.f32.mxu0 0.0
      %492 = vmatmul.mubr.f32.gmra.mrb[0].mxu0 %v284
      %v493 = vpop.f32.mrb[0].mxu0
      %v494 = vadd.f32 %v214, %v493
      %v495 = vpop.f32.mrb[0].mxu0
      %496 = vmatprep.mubr.f32.mxu0 0.0
      %497 = vmatmul.mubr.f32.gmra.mrb[0].mxu0 %v287
      %v498 = vpop.f32.mrb[0].mxu0
      %v499 = vadd.f32 %v214, %v498
      %v500 = vpop.f32.mrb[0].mxu0
      %501 = vmatprep.mubr.f32.mxu0 0.0
      %502 = vmatmul.mubr.f32.gmra.mrb[0].mxu0 %v290
      %v503 = vpop.f32.mrb[0].mxu0
      %v504 = vadd.f32 %v214, %v503
      %v505 = vpop.f32.mrb[0].mxu0
      %506 = vmatprep.mubr.f32.mxu0 0.0
      %507 = vmatmul.mubr.f32.gmra.mrb[0].mxu0 %v293
      %v508 = vpop.f32.mrb[0].mxu0
      %v509 = vadd.f32 %v214, %v508
      %v510 = vpop.f32.mrb[0].mxu0
      %511 = vmatprep.mubr.f32.mxu0 0.0
      %512 = vmatmul.mubr.f32.gmra.mrb[0].mxu0 %v296
      %v513 = vpop.f32.mrb[0].mxu0
      %v514 = vadd.f32 %v214, %v513
      %v515 = vpop.f32.mrb[0].mxu0
      %516 = vmatprep.mubr.f32.mxu0 0.0
      %517 = vmatmul.mubr.f32.gmra.mrb[0].mxu0 %v299
      %v518 = vpop.f32.mrb[0].mxu0
      %v519 = vadd.f32 %v214, %v518
      %v520 = vpop.f32.mrb[0].mxu0
      %521 = vmatprep.mubr.f32.mxu0 0.0
      %522 = vmatmul.mubr.f32.gmra.mrb[0].mxu0 %v302
      %v523 = vpop.f32.mrb[0].mxu0
      %v524 = vadd.f32 %v214, %v523
      %v525 = vpop.f32.mrb[0].mxu0
      %526 = vmatprep.mubr.f32.mxu0 0.0
      %527 = vmatmul.mubr.f32.gmra.mrb[0].mxu0 %v305
      %v528 = vpop.f32.mrb[0].mxu0
      %v529 = vadd.f32 %v214, %v528
      %v530 = vpop.f32.mrb[0].mxu0
      %531 = vmatprep.mubr.f32.mxu0 0.0
      %532 = vmatmul.mubr.f32.gmra.mrb[0].mxu0 %v308
      %v533 = vpop.f32.mrb[0].mxu0
      %v534 = vadd.f32 %v214, %v533
      %v535 = vpop.f32.mrb[0].mxu0
      %536 = vmatprep.mubr.f32.mxu0 0.0
      %537 = vmatmul.mubr.f32.gmra.mrb[0].mxu0 %v311
      %v538 = vpop.f32.mrb[0].mxu0
      %v539 = vadd.f32 %v214, %v538
      %v540 = vpop.f32.mrb[0].mxu0
      %541 = vdwg.mxu0
      %vm542 = vcmask 195584
      %543 = vst.msk [vmem:[%s172] sm:$0xff] %vm542, %v384
      %544 = vst.msk [vmem:[%s172 + $0x8] sm:$0xff] %vm542, %v389
      %545 = vst.msk [vmem:[%s172 + $0x10] sm:$0xff] %vm542, %v394
      %546 = vst.msk [vmem:[%s172 + $0x18] sm:$0xff] %vm542, %v399
      %547 = vst.msk [vmem:[%s172 + $0x20] sm:$0xff] %vm542, %v404
      %548 = vst.msk [vmem:[%s172 + $0x28] sm:$0xff] %vm542, %v409
      %549 = vst.msk [vmem:[%s172 + $0x30] sm:$0xff] %vm542, %v414
      %550 = vst.msk [vmem:[%s172 + $0x38] sm:$0xff] %vm542, %v419
      %551 = vst.msk [vmem:[%s172 + $0x40] sm:$0xff] %vm542, %v424
      %552 = vst.msk [vmem:[%s172 + $0x48] sm:$0xff] %vm542, %v429
      %553 = vst.msk [vmem:[%s172 + $0x50] sm:$0xff] %vm542, %v434
      %554 = vst.msk [vmem:[%s172 + $0x58] sm:$0xff] %vm542, %v439
      %555 = vst.msk [vmem:[%s172 + $0x60] sm:$0xff] %vm542, %v444
      %556 = vst.msk [vmem:[%s172 + $0x68] sm:$0xff] %vm542, %v449
      %557 = vst.msk [vmem:[%s172 + $0x70] sm:$0xff] %vm542, %v454
      %558 = vst.msk [vmem:[%s172 + $0x78] sm:$0xff] %vm542, %v459
      %559 = vst.msk [vmem:[%s172 + $0x80] sm:$0xff] %vm542, %v464
      %560 = vst.msk [vmem:[%s172 + $0x88] sm:$0xff] %vm542, %v469
      %561 = vst.msk [vmem:[%s172 + $0x90] sm:$0xff] %vm542, %v474
      %562 = vst.msk [vmem:[%s172 + $0x98] sm:$0xff] %vm542, %v479
      %563 = vst.msk [vmem:[%s172 + $0xa0] sm:$0xff] %vm542, %v484
      %564 = vst.msk [vmem:[%s172 + $0xa8] sm:$0xff] %vm542, %v489
      %565 = vst.msk [vmem:[%s172 + $0xb0] sm:$0xff] %vm542, %v494
      %566 = vst.msk [vmem:[%s172 + $0xb8] sm:$0xff] %vm542, %v499
      %567 = vst.msk [vmem:[%s172 + $0xc0] sm:$0xff] %vm542, %v504
      %568 = vst.msk [vmem:[%s172 + $0xc8] sm:$0xff] %vm542, %v509
      %569 = vst.msk [vmem:[%s172 + $0xd0] sm:$0xff] %vm542, %v514
      %570 = vst.msk [vmem:[%s172 + $0xd8] sm:$0xff] %vm542, %v519
      %571 = vst.msk [vmem:[%s172 + $0xe0] sm:$0xff] %vm542, %v524
      %572 = vst.msk [vmem:[%s172 + $0xe8] sm:$0xff] %vm542, %v529
      %573 = vst.msk [vmem:[%s172 + $0xf0] sm:$0xff] %vm542, %v534
      %574 = vst.msk [vmem:[%s172 + $0xf8] sm:$0xff] %vm542, %v539
      %s575 = smul.u32 32, %s14
      %p576 = scmp.lt.s32.totalorder %s575, 63
      %s577 = scalar_select %p576, %s575, 63
      %s578 = smul.addr %s577, 8
      %s579 = scalar_lea.vmem %s3, %s578
      // Predicated region
      $region33: #{fno2d_piano_forward.6} parent=31 // pred_check
        %p580 = pneg %p100
      $region34: #{fno2d_piano_forward.6} parent=31 // pred_check_branch
        %582 = sbr.rel (%p580) target = $region36
      $region35: #{fno2d_piano_forward.6} parent=31 // pred_region
        %s583 = smul.u32 32, %s14
      $region36: #{fno2d_piano_forward.6} parent=31 // pred_fallthru
        _
    $region32: #{fno2d_piano_forward.6} parent=5 // pred_fallthru
      _
    %p584 = scmp.le.s32.totalorder 2, %s9
    // Predicated region
    $region37: #{fno2d_piano_forward.6} parent=5 // pred_check
      %p585 = pneg %p584
    $region38: #{fno2d_piano_forward.6} parent=5 // pred_check_branch
      %587 = sbr.rel (%p585) target = $region40
    $region39: #{fno2d_piano_forward.6} parent=5 // pred_region
      %s588 = ssub.s32 %s9, 2
      // Predicated region
      $region41: #{fno2d_piano_forward.6} parent=39 // pred_check
        %p589 = pneg %p106
      $region42: #{fno2d_piano_forward.6} parent=39 // pred_check_branch
        %591 = sbr.rel (%p589) target = $region44
      $region43: #{fno2d_piano_forward.6} parent=39 // pred_region
        %s592 = smul.u32 32, %s15
        %p593 = scmp.lt.s32.totalorder %s592, 63
        %s594 = scalar_select %p593, %s592, 63
        %s595 = smul.addr %s594, 8
        %s596 = scalar_lea.vmem %s3, %s595
      $region44: #{fno2d_piano_forward.6} parent=39 // pred_fallthru
        _
    $region40: #{fno2d_piano_forward.6} parent=5 // pred_fallthru
      _
  $region6: #{fno2d_piano_forward.6} parent=0 // loop_footer
    %s13 = sadd.s32 1, %s9
  $region7: #{fno2d_piano_forward.6} parent=0 // loop_footer_branch
    %8 = sbr.rel target = $region3
  $region8: #{fno2d_piano_forward.6} parent=0 // loop_exit
    _

// kernel: custom-call
$region0: #{custom-call}
  %s0 = inlined_call_operand.hbm [shape: c64[24,24,6,6], index: 0, kind: input, shape index: {}]
  %s1 = inlined_call_operand.vmem [shape: f32[24,24,6,6], index: 1, kind: output, shape index: {}]
  $region1: #{custom-call} parent=0
    #allocation0 [shape = 's32[1]{0}', space=sflag, size = 0x4, scoped, tag = 'scoped memory for custom-call']
    %2 = vsyncpa [#allocation0], 0
    %s3 = sshll.u32 %s1, 4
    %s4 = int_to_ptr.vmem [resolvable:$true] %s3
    %6 = dma.hbm_to_vmem [thread:$0]  %s0, 13824, %s4, [#allocation0]
    %7 = dma.done [#allocation0], 13824
    %8 = vsyncpa [#allocation0], 1

// kernel: custom-call.1
$region0: #{custom-call.1}
  %s0 = inlined_call_operand.hbm [shape: c64[24,24,6,6], index: 0, kind: input, shape index: {}]
  %s1 = inlined_call_operand.vmem [shape: f32[24,24,6,6], index: 1, kind: output, shape index: {}]
  %s2 = scalar_lea.hbm %s0, 13824
  $region1: #{custom-call.1} parent=0
    #allocation0 [shape = 's32[1]{0}', space=sflag, size = 0x4, scoped, tag = 'scoped memory for custom-call.1']
    %3 = vsyncpa [#allocation0], 0
    %s4 = sshll.u32 %s1, 4
    %s5 = int_to_ptr.vmem [resolvable:$true] %s4
    %7 = dma.hbm_to_vmem [thread:$0]  %s2, 13824, %s5, [#allocation0]
    %8 = dma.done [#allocation0], 13824
    %9 = vsyncpa [#allocation0], 1

// kernel: reverse.8
$region0: #{reverse.8}
  #allocation0 [shape = 's32[1]{0}', space=sflag, size = 0x4, scoped, tag = 'scoped memory for reverse.8']
  %s0 = inlined_call_operand.vmem [shape: f32[2,24,16,7], index: 0, kind: input, shape index: {}]
  %s1 = inlined_call_operand.vmem [shape: f32[2,24,16,7], index: 1, kind: output, shape index: {}]
  %s2 = scalar_lea.vmem %s0, 96
  %v3 = vld [vmem:[%s2] sm:$0xff]
  %4 = vst [vmem:[%s1] sm:$0xff] %v3
  %s5 = scalar_lea.vmem %s0, 208
  %v6 = vld [vmem:[%s5] sm:$0xff]
  %s7 = scalar_lea.vmem %s1, 112
  %8 = vst [vmem:[%s7] sm:$0xff] %v6
  %s9 = scalar_lea.vmem %s0, 80
  %v10 = vld [vmem:[%s9] sm:$0xff]
  %s11 = scalar_lea.vmem %s1, 16
  %12 = vst [vmem:[%s11] sm:$0xff] %v10
  %s13 = scalar_lea.vmem %s0, 192
  %v14 = vld [vmem:[%s13] sm:$0xff]
  %s15 = scalar_lea.vmem %s1, 128
  %16 = vst [vmem:[%s15] sm:$0xff] %v14
  %s17 = scalar_lea.vmem %s0, 64
  %v18 = vld [vmem:[%s17] sm:$0xff]
  %s19 = scalar_lea.vmem %s1, 32
  %20 = vst [vmem:[%s19] sm:$0xff] %v18
  %s21 = scalar_lea.vmem %s0, 176
  %v22 = vld [vmem:[%s21] sm:$0xff]
  %s23 = scalar_lea.vmem %s1, 144
  %24 = vst [vmem:[%s23] sm:$0xff] %v22
  %s25 = scalar_lea.vmem %s0, 48
  %v26 = vld [vmem:[%s25] sm:$0xff]
  %s27 = scalar_lea.vmem %s1, 48
  %28 = vst [vmem:[%s27] sm:$0xff] %v26
  %s29 = scalar_lea.vmem %s0, 160
  %v30 = vld [vmem:[%s29] sm:$0xff]
  %s31 = scalar_lea.vmem %s1, 160
  %32 = vst [vmem:[%s31] sm:$0xff] %v30
  %s33 = scalar_lea.vmem %s0, 32
  %v34 = vld [vmem:[%s33] sm:$0xff]
  %s35 = scalar_lea.vmem %s1, 64
  %36 = vst [vmem:[%s35] sm:$0xff] %v34
  %s37 = scalar_lea.vmem %s0, 144
  %v38 = vld [vmem:[%s37] sm:$0xff]
  %s39 = scalar_lea.vmem %s1, 176
  %40 = vst [vmem:[%s39] sm:$0xff] %v38
  %s41 = scalar_lea.vmem %s0, 16
  %v42 = vld [vmem:[%s41] sm:$0xff]
  %s43 = scalar_lea.vmem %s1, 80
  %44 = vst [vmem:[%s43] sm:$0xff] %v42
  %s45 = scalar_lea.vmem %s0, 128
  %v46 = vld [vmem:[%s45] sm:$0xff]
  %s47 = scalar_lea.vmem %s1, 192
  %48 = vst [vmem:[%s47] sm:$0xff] %v46
  %v49 = vld [vmem:[%s0] sm:$0xff]
  %s50 = scalar_lea.vmem %s1, 96
  %51 = vst [vmem:[%s50] sm:$0xff] %v49
  %s52 = scalar_lea.vmem %s0, 112
  %v53 = vld [vmem:[%s52] sm:$0xff]
  %s54 = scalar_lea.vmem %s1, 208
  %55 = vst [vmem:[%s54] sm:$0xff] %v53
  %s56 = scalar_lea.vmem %s0, 104
  %v57 = vld [vmem:[%s56] sm:$0xff]
  %s58 = scalar_lea.vmem %s1, 8
  %59 = vst [vmem:[%s58] sm:$0xff] %v57
  %s60 = scalar_lea.vmem %s0, 216
  %v61 = vld [vmem:[%s60] sm:$0xff]
  %s62 = scalar_lea.vmem %s1, 120
  %63 = vst [vmem:[%s62] sm:$0xff] %v61
  %s64 = scalar_lea.vmem %s0, 88
  %v65 = vld [vmem:[%s64] sm:$0xff]
  %s66 = scalar_lea.vmem %s1, 24
  %67 = vst [vmem:[%s66] sm:$0xff] %v65
  %s68 = scalar_lea.vmem %s0, 200
  %v69 = vld [vmem:[%s68] sm:$0xff]
  %s70 = scalar_lea.vmem %s1, 136
  %71 = vst [vmem:[%s70] sm:$0xff] %v69
  %s72 = scalar_lea.vmem %s0, 72
  %v73 = vld [vmem:[%s72] sm:$0xff]
  %s74 = scalar_lea.vmem %s1, 40
  %75 = vst [vmem:[%s74] sm:$0xff] %v73
  %s76 = scalar_lea.vmem %s0, 184
  %v77 = vld [vmem:[%s76] sm:$0xff]
  %s78 = scalar_lea.vmem %s1, 152
  %79 = vst [vmem:[%s78] sm:$0xff] %v77
  %s80 = scalar_lea.vmem %s0, 56
  %v81 = vld [vmem:[%s80] sm:$0xff]
  %s82 = scalar_lea.vmem %s1, 56
  %83 = vst [vmem:[%s82] sm:$0xff] %v81
  %s84 = scalar_lea.vmem %s0, 168
  %v85 = vld [vmem:[%s84] sm:$0xff]
  %s86 = scalar_lea.vmem %s1, 168
  %87 = vst [vmem:[%s86] sm:$0xff] %v85
  %s88 = scalar_lea.vmem %s0, 40
  %v89 = vld [vmem:[%s88] sm:$0xff]
  %s90 = scalar_lea.vmem %s1, 72
  %91 = vst [vmem:[%s90] sm:$0xff] %v89
  %s92 = scalar_lea.vmem %s0, 152
  %v93 = vld [vmem:[%s92] sm:$0xff]
  %s94 = scalar_lea.vmem %s1, 184
  %95 = vst [vmem:[%s94] sm:$0xff] %v93
  %s96 = scalar_lea.vmem %s0, 24
  %v97 = vld [vmem:[%s96] sm:$0xff]
  %s98 = scalar_lea.vmem %s1, 88
  %99 = vst [vmem:[%s98] sm:$0xff] %v97
  %s100 = scalar_lea.vmem %s0, 136
  %v101 = vld [vmem:[%s100] sm:$0xff]
  %s102 = scalar_lea.vmem %s1, 200
  %103 = vst [vmem:[%s102] sm:$0xff] %v101
  %s104 = scalar_lea.vmem %s0, 8
  %v105 = vld [vmem:[%s104] sm:$0xff]
  %s106 = scalar_lea.vmem %s1, 104
  %107 = vst [vmem:[%s106] sm:$0xff] %v105
  %s108 = scalar_lea.vmem %s0, 120
  %v109 = vld [vmem:[%s108] sm:$0xff]
  %s110 = scalar_lea.vmem %s1, 216
  %111 = vst [vmem:[%s110] sm:$0xff] %v109

// kernel: fno2d_piano_forward.7
$region0: #{fno2d_piano_forward.7}
  #allocation0 [shape = 'u32[]', space=smem, size = 0x4, offset = 0x4, fixed_abs, tag = 'smem constant byte address 0x4 - core index']
  #allocation1 [shape = 'u32[144,128]{1,0:T(1,128)}', space=vmem, size = 0x12000, scoped, tag = 'internal scratch']
  %s0 = inlined_call_operand.vmem [shape: f32[512,24], index: 0, kind: input, shape index: {}]
  %s1 = inlined_call_operand.vmem [shape: f32[512,24], index: 1, kind: input, shape index: {}]
  %s2 = inlined_call_operand.vmem [shape: f32[24,24], index: 2, kind: input, shape index: {}]
  %s3 = inlined_call_operand.vmem [shape: f32[1,24], index: 3, kind: input, shape index: {}]
  %s4 = inlined_call_operand.vmem [shape: f32[512,24], index: 4, kind: output, shape index: {}]
  %s5 = sld [smem:[#allocation0]]
  $region49: #{fno2d_piano_forward.7} parent=0
    _
  %s7 = ssub.s32 1, %s5
  %s8 = scalar_select 0, %s7, %s5
  loop: start=0, step=1, limit=4
  $region2: #{fno2d_piano_forward.7} parent=0 // loop_pre_header
    _
  $region3: #{fno2d_piano_forward.7} parent=0 // loop_header
    %s10 = sphi 0, %s14
    %p11 = scmp.ge.s32.totalorder %s10, 4
    %s20 = sphi 0, %s22
    %s23 = sphi 0, %s20
    %s24 = sphi 0, %s23
    %s40 = sphi 0, %s24
    %s46 = sphi 0, %s48
    %s49 = sphi 0, %s46
    %s50 = sphi 0, %s49
    %s66 = sphi 0, %s50
    %s70 = sphi 0, %s70
    %s72 = sphi 0, %s70
    %s73 = sphi 0, %s72
    %s87 = sphi 0, %s73
    %s91 = sphi 0, %s91
    %s93 = sphi 0, %s91
    %s94 = sphi 0, %s93
    %s108 = sphi 0, %s94
    %s114 = sphi 0, %s116
    %s117 = sphi 0, %s114
    %s118 = sphi 0, %s117
    %s134 = sphi 0, %s118
  $region4: #{fno2d_piano_forward.7} parent=0 // loop_header_branch
    %13 = sbr.rel (%p11) target = $region8
  $region5: #{fno2d_piano_forward.7} parent=0 // loop_body
    %s15 = ssub.s32 %s10, 1
    %s16 = ssub.s32 %s10, 2
    %s17 = sadd.s32 %s10, 1
    %s18 = ssub.s32 %s10, %s17
    %p19 = scmp.eq.s32.totalorder %s18, 0
    %s21 = sadd.s32 %s20, 1
    %s22 = scalar_select %p19, %s20, %s21
    %p25 = pneg %p19
    %p26 = scmp.eq.s32.totalorder %s10, 1
    %p27 = por %p25, %p26
    %p28 = scmp.ne.s32.totalorder %s20, %s23
    %p29 = scmp.eq.s32.totalorder %s10, 0
    %p30 = por %p28, %p29
    %p31 = scmp.ne.s32.totalorder %s20, %s23
    %p32 = scmp.eq.s32.totalorder %s15, 1
    %p33 = por %p31, %p32
    %p34 = scmp.ne.s32.totalorder %s23, %s24
    %p35 = scmp.eq.s32.totalorder %s15, 0
    %p36 = por %p34, %p35
    %p37 = scmp.ne.s32.totalorder %s23, %s24
    %p38 = scmp.eq.s32.totalorder %s16, 1
    %p39 = por %p37, %p38
    %p41 = scmp.ne.s32.totalorder %s24, %s40
    %p42 = scmp.eq.s32.totalorder %s16, 0
    %p43 = por %p41, %p42
    %s44 = ssub.s32 %s10, %s17
    %p45 = scmp.eq.s32.totalorder %s44, 0
    %s47 = sadd.s32 %s46, 1
    %s48 = scalar_select %p45, %s46, %s47
    %p51 = pneg %p45
    %p52 = scmp.eq.s32.totalorder %s10, 1
    %p53 = por %p51, %p52
    %p54 = scmp.ne.s32.totalorder %s46, %s49
    %p55 = scmp.eq.s32.totalorder %s10, 0
    %p56 = por %p54, %p55
    %p57 = scmp.ne.s32.totalorder %s46, %s49
    %p58 = scmp.eq.s32.totalorder %s15, 1
    %p59 = por %p57, %p58
    %p60 = scmp.ne.s32.totalorder %s49, %s50
    %p61 = scmp.eq.s32.totalorder %s15, 0
    %p62 = por %p60, %p61
    %p63 = scmp.ne.s32.totalorder %s49, %s50
    %p64 = scmp.eq.s32.totalorder %s16, 1
    %p65 = por %p63, %p64
    %p67 = scmp.ne.s32.totalorder %s50, %s66
    %p68 = scmp.eq.s32.totalorder %s16, 0
    %p69 = por %p67, %p68
    %s71 = sadd.s32 %s70, 1
    %p74 = scmp.eq.s32.totalorder %s10, 1
    %p75 = scmp.ne.s32.totalorder %s70, %s72
    %p76 = scmp.eq.s32.totalorder %s10, 0
    %p77 = por %p75, %p76
    %p78 = scmp.ne.s32.totalorder %s70, %s72
    %p79 = scmp.eq.s32.totalorder %s15, 1
    %p80 = por %p78, %p79
    %p81 = scmp.ne.s32.totalorder %s72, %s73
    %p82 = scmp.eq.s32.totalorder %s15, 0
    %p83 = por %p81, %p82
    %p84 = scmp.ne.s32.totalorder %s72, %s73
    %p85 = scmp.eq.s32.totalorder %s16, 1
    %p86 = por %p84, %p85
    %p88 = scmp.ne.s32.totalorder %s73, %s87
    %p89 = scmp.eq.s32.totalorder %s16, 0
    %p90 = por %p88, %p89
    %s92 = sadd.s32 %s91, 1
    %p95 = scmp.eq.s32.totalorder %s10, 1
    %p96 = scmp.ne.s32.totalorder %s91, %s93
    %p97 = scmp.eq.s32.totalorder %s10, 0
    %p98 = por %p96, %p97
    %p99 = scmp.ne.s32.totalorder %s91, %s93
    %p100 = scmp.eq.s32.totalorder %s15, 1
    %p101 = por %p99, %p100
    %p102 = scmp.ne.s32.totalorder %s93, %s94
    %p103 = scmp.eq.s32.totalorder %s15, 0
    %p104 = por %p102, %p103
    %p105 = scmp.ne.s32.totalorder %s93, %s94
    %p106 = scmp.eq.s32.totalorder %s16, 1
    %p107 = por %p105, %p106
    %p109 = scmp.ne.s32.totalorder %s94, %s108
    %p110 = scmp.eq.s32.totalorder %s16, 0
    %p111 = por %p109, %p110
    %s112 = ssub.s32 %s10, %s17
    %p113 = scmp.eq.s32.totalorder %s112, 0
    %s115 = sadd.s32 %s114, 1
    %s116 = scalar_select %p113, %s114, %s115
    %p119 = pneg %p113
    %p120 = scmp.eq.s32.totalorder %s10, 1
    %p121 = por %p119, %p120
    %p122 = scmp.ne.s32.totalorder %s114, %s117
    %p123 = scmp.eq.s32.totalorder %s10, 0
    %p124 = por %p122, %p123
    %p125 = scmp.ne.s32.totalorder %s114, %s117
    %p126 = scmp.eq.s32.totalorder %s15, 1
    %p127 = por %p125, %p126
    %p128 = scmp.ne.s32.totalorder %s117, %s118
    %p129 = scmp.eq.s32.totalorder %s15, 0
    %p130 = por %p128, %p129
    %p131 = scmp.ne.s32.totalorder %s117, %s118
    %p132 = scmp.eq.s32.totalorder %s16, 1
    %p133 = por %p131, %p132
    %p135 = scmp.ne.s32.totalorder %s118, %s134
    %p136 = scmp.eq.s32.totalorder %s16, 0
    %p137 = por %p135, %p136
    %p138 = scmp.le.s32.totalorder 1, %s10
    %p139 = scmp.lt.s32.totalorder %s10, 3
    %p140 = pnand %p138, %p139
    %p141 = pneg %p140
    // Predicated region
    $region9: #{fno2d_piano_forward.7} parent=5 // pred_check
      _
    $region10: #{fno2d_piano_forward.7} parent=5 // pred_check_branch
      %143 = sbr.rel (%p140) target = $region12
    $region11: #{fno2d_piano_forward.7} parent=5 // pred_region
      %s144 = ssub.s32 %s10, 1
      // Predicated region
      $region13: #{fno2d_piano_forward.7} parent=11 // pred_check
        %p145 = pneg %p83
      $region14: #{fno2d_piano_forward.7} parent=11 // pred_check_branch
        %147 = sbr.rel (%p145) target = $region16
      $region15: #{fno2d_piano_forward.7} parent=11 // pred_region
        _
      $region16: #{fno2d_piano_forward.7} parent=11 // pred_fallthru
        _
      // Predicated region
      $region17: #{fno2d_piano_forward.7} parent=11 // pred_check
        %p148 = pneg %p104
      $region18: #{fno2d_piano_forward.7} parent=11 // pred_check_branch
        %150 = sbr.rel (%p148) target = $region20
      $region19: #{fno2d_piano_forward.7} parent=11 // pred_region
        _
      $region20: #{fno2d_piano_forward.7} parent=11 // pred_fallthru
        _
    $region12: #{fno2d_piano_forward.7} parent=5 // pred_fallthru
      _
    %p151 = scmp.lt.s32.totalorder %s10, 2
    // Predicated region
    $region21: #{fno2d_piano_forward.7} parent=5 // pred_check
      %p152 = pneg %p151
    $region22: #{fno2d_piano_forward.7} parent=5 // pred_check_branch
      %154 = sbr.rel (%p152) target = $region24
    $region23: #{fno2d_piano_forward.7} parent=5 // pred_region
      // Predicated region
      $region25: #{fno2d_piano_forward.7} parent=23 // pred_check
        %p155 = pneg %p30
      $region26: #{fno2d_piano_forward.7} parent=23 // pred_check_branch
        %157 = sbr.rel (%p155) target = $region28
      $region27: #{fno2d_piano_forward.7} parent=23 // pred_region
        %s158 = smul.u32 32, %s10
        %p159 = scmp.lt.s32.totalorder %s158, 63
        %s160 = scalar_select %p159, %s158, 63
        %s161 = smul.addr %s160, 8
        %s162 = scalar_lea.vmem %s0, %s161
        %s163 = smul.u32 32, %s10
      $region28: #{fno2d_piano_forward.7} parent=23 // pred_fallthru
        _
      // Predicated region
      $region29: #{fno2d_piano_forward.7} parent=23 // pred_check
        %p164 = pneg %p56
      $region30: #{fno2d_piano_forward.7} parent=23 // pred_check_branch
        %166 = sbr.rel (%p164) target = $region32
      $region31: #{fno2d_piano_forward.7} parent=23 // pred_region
        %s167 = smul.u32 32, %s10
        %p168 = scmp.lt.s32.totalorder %s167, 63
        %s169 = scalar_select %p168, %s167, 63
        %s170 = smul.addr %s169, 8
        %s171 = scalar_lea.vmem %s1, %s170
        %s172 = smul.u32 32, %s10
      $region32: #{fno2d_piano_forward.7} parent=23 // pred_fallthru
        _
    $region24: #{fno2d_piano_forward.7} parent=5 // pred_fallthru
      _
    %p173 = scmp.le.s32.totalorder 1, %s10
    %p174 = scmp.lt.s32.totalorder %s10, 3
    %p175 = pnand %p173, %p174
    %p176 = pneg %p175
    // Predicated region
    $region33: #{fno2d_piano_forward.7} parent=5 // pred_check
      _
    $region34: #{fno2d_piano_forward.7} parent=5 // pred_check_branch
      %178 = sbr.rel (%p175) target = $region36
    $region35: #{fno2d_piano_forward.7} parent=5 // pred_region
      %s179 = ssub.s32 %s10, 1
      %s180 = smul.u32 32, %s15
      %p181 = scmp.lt.s32.totalorder %s180, 63
      %s182 = scalar_select %p181, %s180, 63
      %s183 = smul.addr %s182, 8
      %s184 = scalar_lea.vmem %s0, %s183
      %p185 = pneg %p36
      %p186 = pneg %p33
      %s187 = smul.u32 32, %s15
      %p188 = scmp.lt.s32.totalorder %s187, 63
      %s189 = scalar_select %p188, %s187, 63
      %s190 = smul.addr %s189, 8
      %s191 = scalar_lea.vmem %s1, %s190
      %p192 = pneg %p62
      %p193 = pneg %p59
      %p194 = pneg %p83
      %p195 = pneg %p80
      %p196 = pneg %p104
      %p197 = pneg %p101
      %p198 = pneg %p130
      %p199 = pneg %p127
      %s200 = smul.u32 32, %s15
      %p201 = scmp.lt.s32.totalorder %s200, 63
      %s202 = scalar_select %p201, %s200, 63
      %s203 = smul.addr %s202, 8
      %s204 = scalar_lea.vmem %s4, %s203
      %s205 = smul.u32 32, %s15
      %p206 = scmp.lt.s32.totalorder %s205, 63
      %s207 = scalar_select %p206, %s205, 63
      %s208 = smul.addr %s207, 8
      %s209 = scalar_lea.vmem %s0, %s208
      %s210 = smul.u32 32, %s15
      %s211 = smul.u32 32, %s15
      %p212 = scmp.lt.s32.totalorder %s211, 63
      %s213 = scalar_select %p212, %s211, 63
      %s214 = smul.addr %s213, 8
      %s215 = scalar_lea.vmem %s1, %s214
      %s216 = smul.u32 32, %s15
      %s217 = smul.u32 32, %s15
      %p218 = scmp.lt.s32.totalorder %s217, 63
      %s219 = scalar_select %p218, %s217, 63
      %s220 = smul.addr %s219, 8
      %s221 = scalar_lea.vmem %s4, %s220
      %s222 = smul.u32 32, %s15
      %v223 = vld [vmem:[%s209] sm:$0xff]
      %v224 = vld [vmem:[%s209 + $0x8] sm:$0xff]
      %v225 = vld [vmem:[%s209 + $0x10] sm:$0xff]
      %v226 = vld [vmem:[%s209 + $0x18] sm:$0xff]
      %v227 = vld [vmem:[%s209 + $0x20] sm:$0xff]
      %v228 = vld [vmem:[%s209 + $0x28] sm:$0xff]
      %v229 = vld [vmem:[%s209 + $0x30] sm:$0xff]
      %v230 = vld [vmem:[%s209 + $0x38] sm:$0xff]
      %v231 = vld [vmem:[%s209 + $0x40] sm:$0xff]
      %v232 = vld [vmem:[%s209 + $0x48] sm:$0xff]
      %v233 = vld [vmem:[%s209 + $0x50] sm:$0xff]
      %v234 = vld [vmem:[%s209 + $0x58] sm:$0xff]
      %v235 = vld [vmem:[%s209 + $0x60] sm:$0xff]
      %v236 = vld [vmem:[%s209 + $0x68] sm:$0xff]
      %v237 = vld [vmem:[%s209 + $0x70] sm:$0xff]
      %v238 = vld [vmem:[%s209 + $0x78] sm:$0xff]
      %v239 = vld [vmem:[%s209 + $0x80] sm:$0xff]
      %v240 = vld [vmem:[%s209 + $0x88] sm:$0xff]
      %v241 = vld [vmem:[%s209 + $0x90] sm:$0xff]
      %v242 = vld [vmem:[%s209 + $0x98] sm:$0xff]
      %v243 = vld [vmem:[%s209 + $0xa0] sm:$0xff]
      %v244 = vld [vmem:[%s209 + $0xa8] sm:$0xff]
      %v245 = vld [vmem:[%s209 + $0xb0] sm:$0xff]
      %v246 = vld [vmem:[%s209 + $0xb8] sm:$0xff]
      %v247 = vld [vmem:[%s209 + $0xc0] sm:$0xff]
      %v248 = vld [vmem:[%s209 + $0xc8] sm:$0xff]
      %v249 = vld [vmem:[%s209 + $0xd0] sm:$0xff]
      %v250 = vld [vmem:[%s209 + $0xd8] sm:$0xff]
      %v251 = vld [vmem:[%s209 + $0xe0] sm:$0xff]
      %v252 = vld [vmem:[%s209 + $0xe8] sm:$0xff]
      %v253 = vld [vmem:[%s209 + $0xf0] sm:$0xff]
      %v254 = vld [vmem:[%s209 + $0xf8] sm:$0xff]
      %v255 = vld [vmem:[%s2] sm:$0xff]
      %v256 = vld [vmem:[%s2 + $0x8] sm:$0xff]
      %v257 = vld [vmem:[%s2 + $0x10] sm:$0xff]
      %v258 = vld [vmem:[%s3] sm:$0x1]
      %v260 = vlaneseq
      %v261 = vshrl.u32 %v260, 7
      %v262 = vsub.s32 0, %v261
      %v263 = vrot.slane %v258, %v262
      %vm265 = vcmask 195584
      %v267 = vsel %vm265, %v223, 0
      %v270 = vsel %vm265, %v224, 0
      %v273 = vsel %vm265, %v225, 0
      %v276 = vsel %vm265, %v226, 0
      %v279 = vsel %vm265, %v227, 0
      %v282 = vsel %vm265, %v228, 0
      %v285 = vsel %vm265, %v229, 0
      %v288 = vsel %vm265, %v230, 0
      %v291 = vsel %vm265, %v231, 0
      %v294 = vsel %vm265, %v232, 0
      %v297 = vsel %vm265, %v233, 0
      %v300 = vsel %vm265, %v234, 0
      %v303 = vsel %vm265, %v235, 0
      %v306 = vsel %vm265, %v236, 0
      %v309 = vsel %vm265, %v237, 0
      %v312 = vsel %vm265, %v238, 0
      %v315 = vsel %vm265, %v239, 0
      %v318 = vsel %vm265, %v240, 0
      %v321 = vsel %vm265, %v241, 0
      %v324 = vsel %vm265, %v242, 0
      %v327 = vsel %vm265, %v243, 0
      %v330 = vsel %vm265, %v244, 0
      %v333 = vsel %vm265, %v245, 0
      %v336 = vsel %vm265, %v246, 0
      %v339 = vsel %vm265, %v247, 0
      %v342 = vsel %vm265, %v248, 0
      %v345 = vsel %vm265, %v249, 0
      %v348 = vsel %vm265, %v250, 0
      %v351 = vsel %vm265, %v251, 0
      %v354 = vsel %vm265, %v252, 0
      %v357 = vsel %vm265, %v253, 0
      %v360 = vsel %vm265, %v254, 0
      %362 = vmatprep.subr.mxu0 0.0
      %363 = vmatpush1.msra.mxu0 %v255
      %364 = vmatprep.subr.mxu0 0.0
      %365 = vmatpush1.msra.mxu0 %v256
      %366 = vmatprep.subr.mxu0 0.0
      %367 = vmatpush1.msra.mxu0 %v257
      %368 = vmatprep.subr.mxu0 0.0
      %369 = vmatpush1.msra.mxu0 0.0
      %370 = vmatprep.subr.mxu0 0.0
      %371 = vmatpush1.msra.mxu0 0.0
      %372 = vmatprep.subr.mxu0 0.0
      %373 = vmatpush1.msra.mxu0 0.0
      %374 = vmatprep.subr.mxu0 0.0
      %375 = vmatpush1.msra.mxu0 0.0
      %376 = vmatprep.subr.mxu0 0.0
      %377 = vmatpush1.msra.mxu0 0.0
      %378 = vmatprep.subr.mxu0 0.0
      %379 = vmatpush1.msra.mxu0 0.0
      %380 = vmatprep.subr.mxu0 0.0
      %381 = vmatpush1.msra.mxu0 0.0
      %382 = vmatprep.subr.mxu0 0.0
      %383 = vmatpush1.msra.mxu0 0.0
      %384 = vmatprep.subr.mxu0 0.0
      %385 = vmatpush1.msra.mxu0 0.0
      %386 = vmatprep.subr.mxu0 0.0
      %387 = vmatpush1.msra.mxu0 0.0
      %388 = vmatprep.subr.mxu0 0.0
      %389 = vmatpush1.msra.mxu0 0.0
      %390 = vmatprep.subr.mxu0 0.0
      %391 = vmatpush1.msra.mxu0 0.0
      %392 = vmatprep.subr.mxu0 0.0
      %393 = vmatpush1.msra.mxu0 0.0
      %394 = vmatprep.subr.mxu0 0.0
      %395 = vmatpush1.msra.mxu0 0.0
      %396 = vmatprep.subr.mxu0 0.0
      %397 = vmatpush1.msra.mxu0 0.0
      %398 = vmatprep.subr.mxu0 0.0
      %399 = vmatpush1.msra.mxu0 0.0
      %400 = vmatprep.subr.mxu0 0.0
      %401 = vmatpush1.msra.mxu0 0.0
      %402 = vmatprep.subr.mxu0 0.0
      %403 = vmatpush1.msra.mxu0 0.0
      %404 = vmatprep.subr.mxu0 0.0
      %405 = vmatpush1.msra.mxu0 0.0
      %406 = vmatprep.subr.mxu0 0.0
      %407 = vmatpush1.msra.mxu0 0.0
      %408 = vmatprep.subr.mxu0 0.0
      %409 = vmatpush1.msra.mxu0 0.0
      %410 = vmatprep.subr.mxu0 0.0
      %411 = vmatpush1.msra.mxu0 0.0
      %412 = vmatprep.subr.mxu0 0.0
      %413 = vmatpush1.msra.mxu0 0.0
      %414 = vmatprep.subr.mxu0 0.0
      %415 = vmatpush1.msra.mxu0 0.0
      %416 = vmatprep.subr.mxu0 0.0
      %417 = vmatpush1.msra.mxu0 0.0
      %418 = vmatprep.subr.mxu0 0.0
      %419 = vmatpush1.msra.mxu0 0.0
      %420 = vmatprep.subr.mxu0 0.0
      %421 = vmatpush1.msra.mxu0 0.0
      %422 = vmatprep.subr.mxu0 0.0
      %423 = vmatpush1.msra.mxu0 0.0
      %424 = vmatprep.subr.mxu0 0.0
      %425 = vmatpush1.msra.mxu0 0.0
      %426 = vmatprep.mubr.f32.mxu0 0.0
      %427 = vmatmul.mubr.f32.gmra.mrb[0].mxu0 %v267
      %v428 = vpop.f32.mrb[0].mxu0
      %v429 = vadd.f32 %v263, %v428
      %v430 = vpop.f32.mrb[0].mxu0
      %431 = vmatprep.mubr.f32.mxu0 0.0
      %432 = vmatmul.mubr.f32.gmra.mrb[0].mxu0 %v270
      %v433 = vpop.f32.mrb[0].mxu0
      %v434 = vadd.f32 %v263, %v433
      %v435 = vpop.f32.mrb[0].mxu0
      %436 = vmatprep.mubr.f32.mxu0 0.0
      %437 = vmatmul.mubr.f32.gmra.mrb[0].mxu0 %v273
      %v438 = vpop.f32.mrb[0].mxu0
      %v439 = vadd.f32 %v263, %v438
      %v440 = vpop.f32.mrb[0].mxu0
      %441 = vmatprep.mubr.f32.mxu0 0.0
      %442 = vmatmul.mubr.f32.gmra.mrb[0].mxu0 %v276
      %v443 = vpop.f32.mrb[0].mxu0
      %v444 = vadd.f32 %v263, %v443
      %v445 = vpop.f32.mrb[0].mxu0
      %446 = vmatprep.mubr.f32.mxu0 0.0
      %447 = vmatmul.mubr.f32.gmra.mrb[0].mxu0 %v279
      %v448 = vpop.f32.mrb[0].mxu0
      %v449 = vadd.f32 %v263, %v448
      %v450 = vpop.f32.mrb[0].mxu0
      %451 = vmatprep.mubr.f32.mxu0 0.0
      %452 = vmatmul.mubr.f32.gmra.mrb[0].mxu0 %v282
      %v453 = vpop.f32.mrb[0].mxu0
      %v454 = vadd.f32 %v263, %v453
      %v455 = vpop.f32.mrb[0].mxu0
      %456 = vmatprep.mubr.f32.mxu0 0.0
      %457 = vmatmul.mubr.f32.gmra.mrb[0].mxu0 %v285
      %v458 = vpop.f32.mrb[0].mxu0
      %v459 = vadd.f32 %v263, %v458
      %v460 = vpop.f32.mrb[0].mxu0
      %461 = vmatprep.mubr.f32.mxu0 0.0
      %462 = vmatmul.mubr.f32.gmra.mrb[0].mxu0 %v288
      %v463 = vpop.f32.mrb[0].mxu0
      %v464 = vadd.f32 %v263, %v463
      %v465 = vpop.f32.mrb[0].mxu0
      %466 = vmatprep.mubr.f32.mxu0 0.0
      %467 = vmatmul.mubr.f32.gmra.mrb[0].mxu0 %v291
      %v468 = vpop.f32.mrb[0].mxu0
      %v469 = vadd.f32 %v263, %v468
      %v470 = vpop.f32.mrb[0].mxu0
      %471 = vmatprep.mubr.f32.mxu0 0.0
      %472 = vmatmul.mubr.f32.gmra.mrb[0].mxu0 %v294
      %v473 = vpop.f32.mrb[0].mxu0
      %v474 = vadd.f32 %v263, %v473
      %v475 = vpop.f32.mrb[0].mxu0
      %476 = vmatprep.mubr.f32.mxu0 0.0
      %477 = vmatmul.mubr.f32.gmra.mrb[0].mxu0 %v297
      %v478 = vpop.f32.mrb[0].mxu0
      %v479 = vadd.f32 %v263, %v478
      %v480 = vpop.f32.mrb[0].mxu0
      %481 = vmatprep.mubr.f32.mxu0 0.0
      %482 = vmatmul.mubr.f32.gmra.mrb[0].mxu0 %v300
      %v483 = vpop.f32.mrb[0].mxu0
      %v484 = vadd.f32 %v263, %v483
      %v485 = vpop.f32.mrb[0].mxu0
      %486 = vmatprep.mubr.f32.mxu0 0.0
      %487 = vmatmul.mubr.f32.gmra.mrb[0].mxu0 %v303
      %v488 = vpop.f32.mrb[0].mxu0
      %v489 = vadd.f32 %v263, %v488
      %v490 = vpop.f32.mrb[0].mxu0
      %491 = vmatprep.mubr.f32.mxu0 0.0
      %492 = vmatmul.mubr.f32.gmra.mrb[0].mxu0 %v306
      %v493 = vpop.f32.mrb[0].mxu0
      %v494 = vadd.f32 %v263, %v493
      %v495 = vpop.f32.mrb[0].mxu0
      %496 = vmatprep.mubr.f32.mxu0 0.0
      %497 = vmatmul.mubr.f32.gmra.mrb[0].mxu0 %v309
      %v498 = vpop.f32.mrb[0].mxu0
      %v499 = vadd.f32 %v263, %v498
      %v500 = vpop.f32.mrb[0].mxu0
      %501 = vmatprep.mubr.f32.mxu0 0.0
      %502 = vmatmul.mubr.f32.gmra.mrb[0].mxu0 %v312
      %v503 = vpop.f32.mrb[0].mxu0
      %v504 = vadd.f32 %v263, %v503
      %v505 = vpop.f32.mrb[0].mxu0
      %506 = vmatprep.mubr.f32.mxu0 0.0
      %507 = vmatmul.mubr.f32.gmra.mrb[0].mxu0 %v315
      %v508 = vpop.f32.mrb[0].mxu0
      %v509 = vadd.f32 %v263, %v508
      %v510 = vpop.f32.mrb[0].mxu0
      %511 = vmatprep.mubr.f32.mxu0 0.0
      %512 = vmatmul.mubr.f32.gmra.mrb[0].mxu0 %v318
      %v513 = vpop.f32.mrb[0].mxu0
      %v514 = vadd.f32 %v263, %v513
      %v515 = vpop.f32.mrb[0].mxu0
      %516 = vmatprep.mubr.f32.mxu0 0.0
      %517 = vmatmul.mubr.f32.gmra.mrb[0].mxu0 %v321
      %v518 = vpop.f32.mrb[0].mxu0
      %v519 = vadd.f32 %v263, %v518
      %v520 = vpop.f32.mrb[0].mxu0
      %521 = vmatprep.mubr.f32.mxu0 0.0
      %522 = vmatmul.mubr.f32.gmra.mrb[0].mxu0 %v324
      %v523 = vpop.f32.mrb[0].mxu0
      %v524 = vadd.f32 %v263, %v523
      %v525 = vpop.f32.mrb[0].mxu0
      %526 = vmatprep.mubr.f32.mxu0 0.0
      %527 = vmatmul.mubr.f32.gmra.mrb[0].mxu0 %v327
      %v528 = vpop.f32.mrb[0].mxu0
      %v529 = vadd.f32 %v263, %v528
      %v530 = vpop.f32.mrb[0].mxu0
      %531 = vmatprep.mubr.f32.mxu0 0.0
      %532 = vmatmul.mubr.f32.gmra.mrb[0].mxu0 %v330
      %v533 = vpop.f32.mrb[0].mxu0
      %v534 = vadd.f32 %v263, %v533
      %v535 = vpop.f32.mrb[0].mxu0
      %536 = vmatprep.mubr.f32.mxu0 0.0
      %537 = vmatmul.mubr.f32.gmra.mrb[0].mxu0 %v333
      %v538 = vpop.f32.mrb[0].mxu0
      %v539 = vadd.f32 %v263, %v538
      %v540 = vpop.f32.mrb[0].mxu0
      %541 = vmatprep.mubr.f32.mxu0 0.0
      %542 = vmatmul.mubr.f32.gmra.mrb[0].mxu0 %v336
      %v543 = vpop.f32.mrb[0].mxu0
      %v544 = vadd.f32 %v263, %v543
      %v545 = vpop.f32.mrb[0].mxu0
      %546 = vmatprep.mubr.f32.mxu0 0.0
      %547 = vmatmul.mubr.f32.gmra.mrb[0].mxu0 %v339
      %v548 = vpop.f32.mrb[0].mxu0
      %v549 = vadd.f32 %v263, %v548
      %v550 = vpop.f32.mrb[0].mxu0
      %551 = vmatprep.mubr.f32.mxu0 0.0
      %552 = vmatmul.mubr.f32.gmra.mrb[0].mxu0 %v342
      %v553 = vpop.f32.mrb[0].mxu0
      %v554 = vadd.f32 %v263, %v553
      %v555 = vpop.f32.mrb[0].mxu0
      %556 = vmatprep.mubr.f32.mxu0 0.0
      %557 = vmatmul.mubr.f32.gmra.mrb[0].mxu0 %v345
      %v558 = vpop.f32.mrb[0].mxu0
      %v559 = vadd.f32 %v263, %v558
      %v560 = vpop.f32.mrb[0].mxu0
      %561 = vmatprep.mubr.f32.mxu0 0.0
      %562 = vmatmul.mubr.f32.gmra.mrb[0].mxu0 %v348
      %v563 = vpop.f32.mrb[0].mxu0
      %v564 = vadd.f32 %v263, %v563
      %v565 = vpop.f32.mrb[0].mxu0
      %566 = vmatprep.mubr.f32.mxu0 0.0
      %567 = vmatmul.mubr.f32.gmra.mrb[0].mxu0 %v351
      %v568 = vpop.f32.mrb[0].mxu0
      %v569 = vadd.f32 %v263, %v568
      %v570 = vpop.f32.mrb[0].mxu0
      %571 = vmatprep.mubr.f32.mxu0 0.0
      %572 = vmatmul.mubr.f32.gmra.mrb[0].mxu0 %v354
      %v573 = vpop.f32.mrb[0].mxu0
      %v574 = vadd.f32 %v263, %v573
      %v575 = vpop.f32.mrb[0].mxu0
      %576 = vmatprep.mubr.f32.mxu0 0.0
      %577 = vmatmul.mubr.f32.gmra.mrb[0].mxu0 %v357
      %v578 = vpop.f32.mrb[0].mxu0
      %v579 = vadd.f32 %v263, %v578
      %v580 = vpop.f32.mrb[0].mxu0
      %581 = vmatprep.mubr.f32.mxu0 0.0
      %582 = vmatmul.mubr.f32.gmra.mrb[0].mxu0 %v360
      %v583 = vpop.f32.mrb[0].mxu0
      %v584 = vadd.f32 %v263, %v583
      %v585 = vpop.f32.mrb[0].mxu0
      %586 = vdwg.mxu0
      %v587 = vld [vmem:[%s215] sm:$0xff]
      %v588 = vld [vmem:[%s215 + $0x8] sm:$0xff]
      %v589 = vld [vmem:[%s215 + $0x10] sm:$0xff]
      %v590 = vld [vmem:[%s215 + $0x18] sm:$0xff]
      %v591 = vld [vmem:[%s215 + $0x20] sm:$0xff]
      %v592 = vld [vmem:[%s215 + $0x28] sm:$0xff]
      %v593 = vld [vmem:[%s215 + $0x30] sm:$0xff]
      %v594 = vld [vmem:[%s215 + $0x38] sm:$0xff]
      %v595 = vld [vmem:[%s215 + $0x40] sm:$0xff]
      %v596 = vld [vmem:[%s215 + $0x48] sm:$0xff]
      %v597 = vld [vmem:[%s215 + $0x50] sm:$0xff]
      %v598 = vld [vmem:[%s215 + $0x58] sm:$0xff]
      %v599 = vld [vmem:[%s215 + $0x60] sm:$0xff]
      %v600 = vld [vmem:[%s215 + $0x68] sm:$0xff]
      %v601 = vld [vmem:[%s215 + $0x70] sm:$0xff]
      %v602 = vld [vmem:[%s215 + $0x78] sm:$0xff]
      %v603 = vld [vmem:[%s215 + $0x80] sm:$0xff]
      %v604 = vld [vmem:[%s215 + $0x88] sm:$0xff]
      %v605 = vld [vmem:[%s215 + $0x90] sm:$0xff]
      %v606 = vld [vmem:[%s215 + $0x98] sm:$0xff]
      %v607 = vld [vmem:[%s215 + $0xa0] sm:$0xff]
      %v608 = vld [vmem:[%s215 + $0xa8] sm:$0xff]
      %v609 = vld [vmem:[%s215 + $0xb0] sm:$0xff]
      %v610 = vld [vmem:[%s215 + $0xb8] sm:$0xff]
      %v611 = vld [vmem:[%s215 + $0xc0] sm:$0xff]
      %v612 = vld [vmem:[%s215 + $0xc8] sm:$0xff]
      %v613 = vld [vmem:[%s215 + $0xd0] sm:$0xff]
      %v614 = vld [vmem:[%s215 + $0xd8] sm:$0xff]
      %v615 = vld [vmem:[%s215 + $0xe0] sm:$0xff]
      %v616 = vld [vmem:[%s215 + $0xe8] sm:$0xff]
      %v617 = vld [vmem:[%s215 + $0xf0] sm:$0xff]
      %v618 = vld [vmem:[%s215 + $0xf8] sm:$0xff]
      %v619 = vadd.f32 %v429, %v587
      %v620 = vadd.f32 %v434, %v588
      %v621 = vadd.f32 %v439, %v589
      %v622 = vadd.f32 %v444, %v590
      %v623 = vadd.f32 %v449, %v591
      %v624 = vadd.f32 %v454, %v592
      %v625 = vadd.f32 %v459, %v593
      %v626 = vadd.f32 %v464, %v594
      %v627 = vadd.f32 %v469, %v595
      %v628 = vadd.f32 %v474, %v596
      %v629 = vadd.f32 %v479, %v597
      %v630 = vadd.f32 %v484, %v598
      %v631 = vadd.f32 %v489, %v599
      %v632 = vadd.f32 %v494, %v600
      %v633 = vadd.f32 %v499, %v601
      %v634 = vadd.f32 %v504, %v602
      %v635 = vadd.f32 %v509, %v603
      %v636 = vadd.f32 %v514, %v604
      %v637 = vadd.f32 %v519, %v605
      %v638 = vadd.f32 %v524, %v606
      %v639 = vadd.f32 %v529, %v607
      %v640 = vadd.f32 %v534, %v608
      %v641 = vadd.f32 %v539, %v609
      %v642 = vadd.f32 %v544, %v610
      %v643 = vadd.f32 %v549, %v611
      %v644 = vadd.f32 %v554, %v612
      %v645 = vadd.f32 %v559, %v613
      %v646 = vadd.f32 %v564, %v614
      %v647 = vadd.f32 %v569, %v615
      %v648 = vadd.f32 %v574, %v616
      %v649 = vadd.f32 %v579, %v617
      %v650 = vadd.f32 %v584, %v618
      %v651 = vmul.f32 %v619, 0.5
      %v652 = vmul.f32 %v620, 0.5
      %v653 = vmul.f32 %v621, 0.5
      %v654 = vmul.f32 %v622, 0.5
      %v655 = vmul.f32 %v623, 0.5
      %v656 = vmul.f32 %v624, 0.5
      %v657 = vmul.f32 %v625, 0.5
      %v658 = vmul.f32 %v626, 0.5
      %v659 = vmul.f32 %v627, 0.5
      %v660 = vmul.f32 %v628, 0.5
      %v661 = vmul.f32 %v629, 0.5
      %v662 = vmul.f32 %v630, 0.5
      %v663 = vmul.f32 %v631, 0.5
      %v664 = vmul.f32 %v632, 0.5
      %v665 = vmul.f32 %v633, 0.5
      %v666 = vmul.f32 %v634, 0.5
      %v667 = vmul.f32 %v635, 0.5
      %v668 = vmul.f32 %v636, 0.5
      %v669 = vmul.f32 %v637, 0.5
      %v670 = vmul.f32 %v638, 0.5
      %v671 = vmul.f32 %v639, 0.5
      %v672 = vmul.f32 %v640, 0.5
      %v673 = vmul.f32 %v641, 0.5
      %v674 = vmul.f32 %v642, 0.5
      %v675 = vmul.f32 %v643, 0.5
      %v676 = vmul.f32 %v644, 0.5
      %v677 = vmul.f32 %v645, 0.5
      %v678 = vmul.f32 %v646, 0.5
      %v679 = vmul.f32 %v647, 0.5
      %v680 = vmul.f32 %v648, 0.5
      %v681 = vmul.f32 %v649, 0.5
      %v682 = vmul.f32 %v650, 0.5
      %v683 = vmul.f32 %v619, 0.70710677
      %v684 = vmul.f32 %v620, 0.70710677
      %v685 = vmul.f32 %v621, 0.70710677
      %v686 = vmul.f32 %v622, 0.70710677
      %v687 = vmul.f32 %v623, 0.70710677
      %v688 = vmul.f32 %v624, 0.70710677
      %v689 = vmul.f32 %v625, 0.70710677
      %v690 = vmul.f32 %v626, 0.70710677
      %v691 = vmul.f32 %v627, 0.70710677
      %v692 = vmul.f32 %v628, 0.70710677
      %v693 = vmul.f32 %v629, 0.70710677
      %v694 = vmul.f32 %v630, 0.70710677
      %v695 = vmul.f32 %v631, 0.70710677
      %v696 = vmul.f32 %v632, 0.70710677
      %v697 = vmul.f32 %v633, 0.70710677
      %v698 = vmul.f32 %v634, 0.70710677
      %v699 = vmul.f32 %v635, 0.70710677
      %v700 = vmul.f32 %v636, 0.70710677
      %v701 = vmul.f32 %v637, 0.70710677
      %v702 = vmul.f32 %v638, 0.70710677
      %v703 = vmul.f32 %v639, 0.70710677
      %v704 = vmul.f32 %v640, 0.70710677
      %v705 = vmul.f32 %v641, 0.70710677
      %v706 = vmul.f32 %v642, 0.70710677
      %v707 = vmul.f32 %v643, 0.70710677
      %v708 = vmul.f32 %v644, 0.70710677
      %v709 = vmul.f32 %v645, 0.70710677
      %v710 = vmul.f32 %v646, 0.70710677
      %v711 = vmul.f32 %v647, 0.70710677
      %v712 = vmul.f32 %v648, 0.70710677
      %v713 = vmul.f32 %v649, 0.70710677
      %v714 = vmul.f32 %v650, 0.70710677
      %v715 = verf.f32.pop %v683
      %v716 = verf.f32.pop %v684
      %v717 = verf.f32.pop %v685
      %v718 = verf.f32.pop %v686
      %v719 = verf.f32.pop %v687
      %v720 = verf.f32.pop %v688
      %v721 = verf.f32.pop %v689
      %v722 = verf.f32.pop %v690
      %v723 = verf.f32.pop %v691
      %v724 = verf.f32.pop %v692
      %v725 = verf.f32.pop %v693
      %v726 = verf.f32.pop %v694
      %v727 = verf.f32.pop %v695
      %v728 = verf.f32.pop %v696
      %v729 = verf.f32.pop %v697
      %v730 = verf.f32.pop %v698
      %v731 = verf.f32.pop %v699
      %v732 = verf.f32.pop %v700
      %v733 = verf.f32.pop %v701
      %v734 = verf.f32.pop %v702
      %v735 = verf.f32.pop %v703
      %v736 = verf.f32.pop %v704
      %v737 = verf.f32.pop %v705
      %v738 = verf.f32.pop %v706
      %v739 = verf.f32.pop %v707
      %v740 = verf.f32.pop %v708
      %v741 = verf.f32.pop %v709
      %v742 = verf.f32.pop %v710
      %v743 = verf.f32.pop %v711
      %v744 = verf.f32.pop %v712
      %v745 = verf.f32.pop %v713
      %v746 = verf.f32.pop %v714
      %v747 = vadd.f32 %v715, 1.0
      %v748 = vadd.f32 %v716, 1.0
      %v749 = vadd.f32 %v717, 1.0
      %v750 = vadd.f32 %v718, 1.0
      %v751 = vadd.f32 %v719, 1.0
      %v752 = vadd.f32 %v720, 1.0
      %v753 = vadd.f32 %v721, 1.0
      %v754 = vadd.f32 %v722, 1.0
      %v755 = vadd.f32 %v723, 1.0
      %v756 = vadd.f32 %v724, 1.0
      %v757 = vadd.f32 %v725, 1.0
      %v758 = vadd.f32 %v726, 1.0
      %v759 = vadd.f32 %v727, 1.0
      %v760 = vadd.f32 %v728, 1.0
      %v761 = vadd.f32 %v729, 1.0
      %v762 = vadd.f32 %v730, 1.0
      %v763 = vadd.f32 %v731, 1.0
      %v764 = vadd.f32 %v732, 1.0
      %v765 = vadd.f32 %v733, 1.0
      %v766 = vadd.f32 %v734, 1.0
      %v767 = vadd.f32 %v735, 1.0
      %v768 = vadd.f32 %v736, 1.0
      %v769 = vadd.f32 %v737, 1.0
      %v770 = vadd.f32 %v738, 1.0
      %v771 = vadd.f32 %v739, 1.0
      %v772 = vadd.f32 %v740, 1.0
      %v773 = vadd.f32 %v741, 1.0
      %v774 = vadd.f32 %v742, 1.0
      %v775 = vadd.f32 %v743, 1.0
      %v776 = vadd.f32 %v744, 1.0
      %v777 = vadd.f32 %v745, 1.0
      %v778 = vadd.f32 %v746, 1.0
      %v779 = vmul.f32 %v651, %v747
      %v780 = vmul.f32 %v652, %v748
      %v781 = vmul.f32 %v653, %v749
      %v782 = vmul.f32 %v654, %v750
      %v783 = vmul.f32 %v655, %v751
      %v784 = vmul.f32 %v656, %v752
      %v785 = vmul.f32 %v657, %v753
      %v786 = vmul.f32 %v658, %v754
      %v787 = vmul.f32 %v659, %v755
      %v788 = vmul.f32 %v660, %v756
      %v789 = vmul.f32 %v661, %v757
      %v790 = vmul.f32 %v662, %v758
      %v791 = vmul.f32 %v663, %v759
      %v792 = vmul.f32 %v664, %v760
      %v793 = vmul.f32 %v665, %v761
      %v794 = vmul.f32 %v666, %v762
      %v795 = vmul.f32 %v667, %v763
      %v796 = vmul.f32 %v668, %v764
      %v797 = vmul.f32 %v669, %v765
      %v798 = vmul.f32 %v670, %v766
      %v799 = vmul.f32 %v671, %v767
      %v800 = vmul.f32 %v672, %v768
      %v801 = vmul.f32 %v673, %v769
      %v802 = vmul.f32 %v674, %v770
      %v803 = vmul.f32 %v675, %v771
      %v804 = vmul.f32 %v676, %v772
      %v805 = vmul.f32 %v677, %v773
      %v806 = vmul.f32 %v678, %v774
      %v807 = vmul.f32 %v679, %v775
      %v808 = vmul.f32 %v680, %v776
      %v809 = vmul.f32 %v681, %v777
      %v810 = vmul.f32 %v682, %v778
      %811 = vst.msk [vmem:[%s221] sm:$0xff] %vm265, %v779
      %812 = vst.msk [vmem:[%s221 + $0x8] sm:$0xff] %vm265, %v780
      %813 = vst.msk [vmem:[%s221 + $0x10] sm:$0xff] %vm265, %v781
      %814 = vst.msk [vmem:[%s221 + $0x18] sm:$0xff] %vm265, %v782
      %815 = vst.msk [vmem:[%s221 + $0x20] sm:$0xff] %vm265, %v783
      %816 = vst.msk [vmem:[%s221 + $0x28] sm:$0xff] %vm265, %v784
      %817 = vst.msk [vmem:[%s221 + $0x30] sm:$0xff] %vm265, %v785
      %818 = vst.msk [vmem:[%s221 + $0x38] sm:$0xff] %vm265, %v786
      %819 = vst.msk [vmem:[%s221 + $0x40] sm:$0xff] %vm265, %v787
      %820 = vst.msk [vmem:[%s221 + $0x48] sm:$0xff] %vm265, %v788
      %821 = vst.msk [vmem:[%s221 + $0x50] sm:$0xff] %vm265, %v789
      %822 = vst.msk [vmem:[%s221 + $0x58] sm:$0xff] %vm265, %v790
      %823 = vst.msk [vmem:[%s221 + $0x60] sm:$0xff] %vm265, %v791
      %824 = vst.msk [vmem:[%s221 + $0x68] sm:$0xff] %vm265, %v792
      %825 = vst.msk [vmem:[%s221 + $0x70] sm:$0xff] %vm265, %v793
      %826 = vst.msk [vmem:[%s221 + $0x78] sm:$0xff] %vm265, %v794
      %827 = vst.msk [vmem:[%s221 + $0x80] sm:$0xff] %vm265, %v795
      %828 = vst.msk [vmem:[%s221 + $0x88] sm:$0xff] %vm265, %v796
      %829 = vst.msk [vmem:[%s221 + $0x90] sm:$0xff] %vm265, %v797
      %830 = vst.msk [vmem:[%s221 + $0x98] sm:$0xff] %vm265, %v798
      %831 = vst.msk [vmem:[%s221 + $0xa0] sm:$0xff] %vm265, %v799
      %832 = vst.msk [vmem:[%s221 + $0xa8] sm:$0xff] %vm265, %v800
      %833 = vst.msk [vmem:[%s221 + $0xb0] sm:$0xff] %vm265, %v801
      %834 = vst.msk [vmem:[%s221 + $0xb8] sm:$0xff] %vm265, %v802
      %835 = vst.msk [vmem:[%s221 + $0xc0] sm:$0xff] %vm265, %v803
      %836 = vst.msk [vmem:[%s221 + $0xc8] sm:$0xff] %vm265, %v804
      %837 = vst.msk [vmem:[%s221 + $0xd0] sm:$0xff] %vm265, %v805
      %838 = vst.msk [vmem:[%s221 + $0xd8] sm:$0xff] %vm265, %v806
      %839 = vst.msk [vmem:[%s221 + $0xe0] sm:$0xff] %vm265, %v807
      %840 = vst.msk [vmem:[%s221 + $0xe8] sm:$0xff] %vm265, %v808
      %841 = vst.msk [vmem:[%s221 + $0xf0] sm:$0xff] %vm265, %v809
      %842 = vst.msk [vmem:[%s221 + $0xf8] sm:$0xff] %vm265, %v810
      %s843 = smul.u32 32, %s15
      %p844 = scmp.lt.s32.totalorder %s843, 63
      %s845 = scalar_select %p844, %s843, 63
      %s846 = smul.addr %s845, 8
      %s847 = scalar_lea.vmem %s4, %s846
      // Predicated region
      $region37: #{fno2d_piano_forward.7} parent=35 // pred_check
        %p848 = pneg %p127
      $region38: #{fno2d_piano_forward.7} parent=35 // pred_check_branch
        %850 = sbr.rel (%p848) target = $region40
      $region39: #{fno2d_piano_forward.7} parent=35 // pred_region
        %s851 = smul.u32 32, %s15
      $region40: #{fno2d_piano_forward.7} parent=35 // pred_fallthru
        _
    $region36: #{fno2d_piano_forward.7} parent=5 // pred_fallthru
      _
    %p852 = scmp.le.s32.totalorder 2, %s10
    // Predicated region
    $region41: #{fno2d_piano_forward.7} parent=5 // pred_check
      %p853 = pneg %p852
    $region42: #{fno2d_piano_forward.7} parent=5 // pred_check_branch
      %855 = sbr.rel (%p853) target = $region44
    $region43: #{fno2d_piano_forward.7} parent=5 // pred_region
      %s856 = ssub.s32 %s10, 2
      // Predicated region
      $region45: #{fno2d_piano_forward.7} parent=43 // pred_check
        %p857 = pneg %p133
      $region46: #{fno2d_piano_forward.7} parent=43 // pred_check_branch
        %859 = sbr.rel (%p857) target = $region48
      $region47: #{fno2d_piano_forward.7} parent=43 // pred_region
        %s860 = smul.u32 32, %s16
        %p861 = scmp.lt.s32.totalorder %s860, 63
        %s862 = scalar_select %p861, %s860, 63
        %s863 = smul.addr %s862, 8
        %s864 = scalar_lea.vmem %s4, %s863
      $region48: #{fno2d_piano_forward.7} parent=43 // pred_fallthru
        _
    $region44: #{fno2d_piano_forward.7} parent=5 // pred_fallthru
      _
  $region6: #{fno2d_piano_forward.7} parent=0 // loop_footer
    %s14 = sadd.s32 1, %s10
  $region7: #{fno2d_piano_forward.7} parent=0 // loop_footer_branch
    %9 = sbr.rel target = $region3
  $region8: #{fno2d_piano_forward.7} parent=0 // loop_exit
    _

// kernel: fno2d_piano_forward.11
$region0: #{fno2d_piano_forward.11}
  #allocation0 [shape = 'u32[]', space=smem, size = 0x4, offset = 0x4, fixed_abs, tag = 'smem constant byte address 0x4 - core index']
  #allocation1 [shape = 'u32[144,128]{1,0:T(1,128)}', space=vmem, size = 0x12000, scoped, tag = 'internal scratch']
  #allocation2 [shape = 'f32[256,128]{1,0:T(8,128)}', space=vmem, size = 0x20000, scoped, tag = 'scratch operand']
  #allocation3 [shape = 'f32[1,1]{1,0:T(1,128)S(1)}', space=vmem, size = 0x200, scoped, tag = 'scoped memory for fno2d_piano_forward.11']
  %s0 = inlined_call_operand.vmem [shape: f32[512,24], index: 0, kind: input, shape index: {}]
  %s1 = inlined_call_operand.vmem [shape: f32[24,128], index: 1, kind: input, shape index: {}]
  %s2 = inlined_call_operand.vmem [shape: f32[1,128], index: 2, kind: input, shape index: {}]
  %s3 = inlined_call_operand.vmem [shape: f32[1,128], index: 3, kind: input, shape index: {}]
  %s4 = inlined_call_operand.<no memory space> [shape: f32[1,1], index: 4, kind: input, shape index: {}]
  %s5 = inlined_call_operand.vmem [shape: f32[1,512], index: 5, kind: output, shape index: {}]
  %s6 = sld [smem:[#allocation0]]
  $region53: #{fno2d_piano_forward.11} parent=0
    _
  %s8 = ssub.s32 1, %s6
  %s9 = scalar_select 0, %s8, %s6
  %v10 = vstv %s4
  %11 = vst [vmem:[#allocation3] sm:$0x1] %v10
  loop: start=0, step=1, limit=4
  $region2: #{fno2d_piano_forward.11} parent=0 // loop_pre_header
    _
  $region3: #{fno2d_piano_forward.11} parent=0 // loop_header
    %s13 = sphi 0, %s17
    %p14 = scmp.ge.s32.totalorder %s13, 4
    %s23 = sphi 0, %s25
    %s26 = sphi 0, %s23
    %s27 = sphi 0, %s26
    %s43 = sphi 0, %s27
    %s47 = sphi 0, %s47
    %s49 = sphi 0, %s47
    %s50 = sphi 0, %s49
    %s64 = sphi 0, %s50
    %s68 = sphi 0, %s68
    %s70 = sphi 0, %s68
    %s71 = sphi 0, %s70
    %s85 = sphi 0, %s71
    %s89 = sphi 0, %s89
    %s91 = sphi 0, %s89
    %s92 = sphi 0, %s91
    %s106 = sphi 0, %s92
    %s110 = sphi 0, %s110
    %s112 = sphi 0, %s110
    %s113 = sphi 0, %s112
    %s127 = sphi 0, %s113
    %s133 = sphi 0, %s135
    %s136 = sphi 0, %s133
    %s137 = sphi 0, %s136
    %s153 = sphi 0, %s137
  $region4: #{fno2d_piano_forward.11} parent=0 // loop_header_branch
    %16 = sbr.rel (%p14) target = $region8
  $region5: #{fno2d_piano_forward.11} parent=0 // loop_body
    %s18 = ssub.s32 %s13, 1
    %s19 = ssub.s32 %s13, 2
    %s20 = sadd.s32 %s13, 1
    %s21 = ssub.s32 %s13, %s20
    %p22 = scmp.eq.s32.totalorder %s21, 0
    %s24 = sadd.s32 %s23, 1
    %s25 = scalar_select %p22, %s23, %s24
    %p28 = pneg %p22
    %p29 = scmp.eq.s32.totalorder %s13, 1
    %p30 = por %p28, %p29
    %p31 = scmp.ne.s32.totalorder %s23, %s26
    %p32 = scmp.eq.s32.totalorder %s13, 0
    %p33 = por %p31, %p32
    %p34 = scmp.ne.s32.totalorder %s23, %s26
    %p35 = scmp.eq.s32.totalorder %s18, 1
    %p36 = por %p34, %p35
    %p37 = scmp.ne.s32.totalorder %s26, %s27
    %p38 = scmp.eq.s32.totalorder %s18, 0
    %p39 = por %p37, %p38
    %p40 = scmp.ne.s32.totalorder %s26, %s27
    %p41 = scmp.eq.s32.totalorder %s19, 1
    %p42 = por %p40, %p41
    %p44 = scmp.ne.s32.totalorder %s27, %s43
    %p45 = scmp.eq.s32.totalorder %s19, 0
    %p46 = por %p44, %p45
    %s48 = sadd.s32 %s47, 1
    %p51 = scmp.eq.s32.totalorder %s13, 1
    %p52 = scmp.ne.s32.totalorder %s47, %s49
    %p53 = scmp.eq.s32.totalorder %s13, 0
    %p54 = por %p52, %p53
    %p55 = scmp.ne.s32.totalorder %s47, %s49
    %p56 = scmp.eq.s32.totalorder %s18, 1
    %p57 = por %p55, %p56
    %p58 = scmp.ne.s32.totalorder %s49, %s50
    %p59 = scmp.eq.s32.totalorder %s18, 0
    %p60 = por %p58, %p59
    %p61 = scmp.ne.s32.totalorder %s49, %s50
    %p62 = scmp.eq.s32.totalorder %s19, 1
    %p63 = por %p61, %p62
    %p65 = scmp.ne.s32.totalorder %s50, %s64
    %p66 = scmp.eq.s32.totalorder %s19, 0
    %p67 = por %p65, %p66
    %s69 = sadd.s32 %s68, 1
    %p72 = scmp.eq.s32.totalorder %s13, 1
    %p73 = scmp.ne.s32.totalorder %s68, %s70
    %p74 = scmp.eq.s32.totalorder %s13, 0
    %p75 = por %p73, %p74
    %p76 = scmp.ne.s32.totalorder %s68, %s70
    %p77 = scmp.eq.s32.totalorder %s18, 1
    %p78 = por %p76, %p77
    %p79 = scmp.ne.s32.totalorder %s70, %s71
    %p80 = scmp.eq.s32.totalorder %s18, 0
    %p81 = por %p79, %p80
    %p82 = scmp.ne.s32.totalorder %s70, %s71
    %p83 = scmp.eq.s32.totalorder %s19, 1
    %p84 = por %p82, %p83
    %p86 = scmp.ne.s32.totalorder %s71, %s85
    %p87 = scmp.eq.s32.totalorder %s19, 0
    %p88 = por %p86, %p87
    %s90 = sadd.s32 %s89, 1
    %p93 = scmp.eq.s32.totalorder %s13, 1
    %p94 = scmp.ne.s32.totalorder %s89, %s91
    %p95 = scmp.eq.s32.totalorder %s13, 0
    %p96 = por %p94, %p95
    %p97 = scmp.ne.s32.totalorder %s89, %s91
    %p98 = scmp.eq.s32.totalorder %s18, 1
    %p99 = por %p97, %p98
    %p100 = scmp.ne.s32.totalorder %s91, %s92
    %p101 = scmp.eq.s32.totalorder %s18, 0
    %p102 = por %p100, %p101
    %p103 = scmp.ne.s32.totalorder %s91, %s92
    %p104 = scmp.eq.s32.totalorder %s19, 1
    %p105 = por %p103, %p104
    %p107 = scmp.ne.s32.totalorder %s92, %s106
    %p108 = scmp.eq.s32.totalorder %s19, 0
    %p109 = por %p107, %p108
    %s111 = sadd.s32 %s110, 1
    %p114 = scmp.eq.s32.totalorder %s13, 1
    %p115 = scmp.ne.s32.totalorder %s110, %s112
    %p116 = scmp.eq.s32.totalorder %s13, 0
    %p117 = por %p115, %p116
    %p118 = scmp.ne.s32.totalorder %s110, %s112
    %p119 = scmp.eq.s32.totalorder %s18, 1
    %p120 = por %p118, %p119
    %p121 = scmp.ne.s32.totalorder %s112, %s113
    %p122 = scmp.eq.s32.totalorder %s18, 0
    %p123 = por %p121, %p122
    %p124 = scmp.ne.s32.totalorder %s112, %s113
    %p125 = scmp.eq.s32.totalorder %s19, 1
    %p126 = por %p124, %p125
    %p128 = scmp.ne.s32.totalorder %s113, %s127
    %p129 = scmp.eq.s32.totalorder %s19, 0
    %p130 = por %p128, %p129
    %s131 = ssub.s32 %s13, %s20
    %p132 = scmp.eq.s32.totalorder %s131, 0
    %s134 = sadd.s32 %s133, 1
    %s135 = scalar_select %p132, %s133, %s134
    %p138 = pneg %p132
    %p139 = scmp.eq.s32.totalorder %s13, 1
    %p140 = por %p138, %p139
    %p141 = scmp.ne.s32.totalorder %s133, %s136
    %p142 = scmp.eq.s32.totalorder %s13, 0
    %p143 = por %p141, %p142
    %p144 = scmp.ne.s32.totalorder %s133, %s136
    %p145 = scmp.eq.s32.totalorder %s18, 1
    %p146 = por %p144, %p145
    %p147 = scmp.ne.s32.totalorder %s136, %s137
    %p148 = scmp.eq.s32.totalorder %s18, 0
    %p149 = por %p147, %p148
    %p150 = scmp.ne.s32.totalorder %s136, %s137
    %p151 = scmp.eq.s32.totalorder %s19, 1
    %p152 = por %p150, %p151
    %p154 = scmp.ne.s32.totalorder %s137, %s153
    %p155 = scmp.eq.s32.totalorder %s19, 0
    %p156 = por %p154, %p155
    %p157 = scmp.le.s32.totalorder 1, %s13
    %p158 = scmp.lt.s32.totalorder %s13, 3
    %p159 = pnand %p157, %p158
    %p160 = pneg %p159
    // Predicated region
    $region9: #{fno2d_piano_forward.11} parent=5 // pred_check
      _
    $region10: #{fno2d_piano_forward.11} parent=5 // pred_check_branch
      %162 = sbr.rel (%p159) target = $region12
    $region11: #{fno2d_piano_forward.11} parent=5 // pred_region
      %s163 = ssub.s32 %s13, 1
      // Predicated region
      $region13: #{fno2d_piano_forward.11} parent=11 // pred_check
        %p164 = pneg %p60
      $region14: #{fno2d_piano_forward.11} parent=11 // pred_check_branch
        %166 = sbr.rel (%p164) target = $region16
      $region15: #{fno2d_piano_forward.11} parent=11 // pred_region
        _
      $region16: #{fno2d_piano_forward.11} parent=11 // pred_fallthru
        _
      // Predicated region
      $region17: #{fno2d_piano_forward.11} parent=11 // pred_check
        %p167 = pneg %p81
      $region18: #{fno2d_piano_forward.11} parent=11 // pred_check_branch
        %169 = sbr.rel (%p167) target = $region20
      $region19: #{fno2d_piano_forward.11} parent=11 // pred_region
        _
      $region20: #{fno2d_piano_forward.11} parent=11 // pred_fallthru
        _
      // Predicated region
      $region21: #{fno2d_piano_forward.11} parent=11 // pred_check
        %p170 = pneg %p102
      $region22: #{fno2d_piano_forward.11} parent=11 // pred_check_branch
        %172 = sbr.rel (%p170) target = $region24
      $region23: #{fno2d_piano_forward.11} parent=11 // pred_region
        _
      $region24: #{fno2d_piano_forward.11} parent=11 // pred_fallthru
        _
      // Predicated region
      $region25: #{fno2d_piano_forward.11} parent=11 // pred_check
        %p173 = pneg %p123
      $region26: #{fno2d_piano_forward.11} parent=11 // pred_check_branch
        %175 = sbr.rel (%p173) target = $region28
      $region27: #{fno2d_piano_forward.11} parent=11 // pred_region
        _
      $region28: #{fno2d_piano_forward.11} parent=11 // pred_fallthru
        _
    $region12: #{fno2d_piano_forward.11} parent=5 // pred_fallthru
      _
    %p176 = scmp.lt.s32.totalorder %s13, 2
    // Predicated region
    $region29: #{fno2d_piano_forward.11} parent=5 // pred_check
      %p177 = pneg %p176
    $region30: #{fno2d_piano_forward.11} parent=5 // pred_check_branch
      %179 = sbr.rel (%p177) target = $region32
    $region31: #{fno2d_piano_forward.11} parent=5 // pred_region
      // Predicated region
      $region33: #{fno2d_piano_forward.11} parent=31 // pred_check
        %p180 = pneg %p33
      $region34: #{fno2d_piano_forward.11} parent=31 // pred_check_branch
        %182 = sbr.rel (%p180) target = $region36
      $region35: #{fno2d_piano_forward.11} parent=31 // pred_region
        %s183 = smul.u32 32, %s13
        %p184 = scmp.lt.s32.totalorder %s183, 63
        %s185 = scalar_select %p184, %s183, 63
        %s186 = smul.addr %s185, 8
        %s187 = scalar_lea.vmem %s0, %s186
        %s188 = smul.u32 32, %s13
      $region36: #{fno2d_piano_forward.11} parent=31 // pred_fallthru
        _
    $region32: #{fno2d_piano_forward.11} parent=5 // pred_fallthru
      _
    %p189 = scmp.le.s32.totalorder 1, %s13
    %p190 = scmp.lt.s32.totalorder %s13, 3
    %p191 = pnand %p189, %p190
    %p192 = pneg %p191
    // Predicated region
    $region37: #{fno2d_piano_forward.11} parent=5 // pred_check
      _
    $region38: #{fno2d_piano_forward.11} parent=5 // pred_check_branch
      %194 = sbr.rel (%p191) target = $region40
    $region39: #{fno2d_piano_forward.11} parent=5 // pred_region
      %s195 = ssub.s32 %s13, 1
      %s196 = smul.u32 32, %s18
      %p197 = scmp.lt.s32.totalorder %s196, 63
      %s198 = scalar_select %p197, %s196, 63
      %s199 = smul.addr %s198, 8
      %s200 = scalar_lea.vmem %s0, %s199
      %p201 = pneg %p39
      %p202 = pneg %p36
      %p203 = pneg %p60
      %p204 = pneg %p57
      %p205 = pneg %p81
      %p206 = pneg %p78
      %p207 = pneg %p102
      %p208 = pneg %p99
      %p209 = pneg %p123
      %p210 = pneg %p120
      %p211 = pneg %p149
      %p212 = pneg %p146
      %s213 = smul.u32 2, %s18
      %p214 = scmp.lt.s32.totalorder %s213, 3
      %s215 = scalar_select %p214, %s213, 3
      %s216 = scalar_lea.vmem %s5, %s215
      %s217 = smul.u32 32, %s18
      %p218 = scmp.lt.s32.totalorder %s217, 63
      %s219 = scalar_select %p218, %s217, 63
      %s220 = smul.addr %s219, 8
      %s221 = scalar_lea.vmem %s0, %s220
      %s222 = smul.u32 32, %s18
      %s223 = smul.u32 2, %s18
      %p224 = scmp.lt.s32.totalorder %s223, 3
      %s225 = scalar_select %p224, %s223, 3
      %s226 = scalar_lea.vmem %s5, %s225
      %s227 = smul.u32 2, %s18
      %v228 = vld [vmem:[%s221] sm:$0xff]
      %v229 = vld [vmem:[%s221 + $0x8] sm:$0xff]
      %v230 = vld [vmem:[%s221 + $0x10] sm:$0xff]
      %v231 = vld [vmem:[%s221 + $0x18] sm:$0xff]
      %v232 = vld [vmem:[%s221 + $0x20] sm:$0xff]
      %v233 = vld [vmem:[%s221 + $0x28] sm:$0xff]
      %v234 = vld [vmem:[%s221 + $0x30] sm:$0xff]
      %v235 = vld [vmem:[%s221 + $0x38] sm:$0xff]
      %v236 = vld [vmem:[%s221 + $0x40] sm:$0xff]
      %v237 = vld [vmem:[%s221 + $0x48] sm:$0xff]
      %v238 = vld [vmem:[%s221 + $0x50] sm:$0xff]
      %v239 = vld [vmem:[%s221 + $0x58] sm:$0xff]
      %v240 = vld [vmem:[%s221 + $0x60] sm:$0xff]
      %v241 = vld [vmem:[%s221 + $0x68] sm:$0xff]
      %v242 = vld [vmem:[%s221 + $0x70] sm:$0xff]
      %v243 = vld [vmem:[%s221 + $0x78] sm:$0xff]
      %v244 = vld [vmem:[%s221 + $0x80] sm:$0xff]
      %v245 = vld [vmem:[%s221 + $0x88] sm:$0xff]
      %v246 = vld [vmem:[%s221 + $0x90] sm:$0xff]
      %v247 = vld [vmem:[%s221 + $0x98] sm:$0xff]
      %v248 = vld [vmem:[%s221 + $0xa0] sm:$0xff]
      %v249 = vld [vmem:[%s221 + $0xa8] sm:$0xff]
      %v250 = vld [vmem:[%s221 + $0xb0] sm:$0xff]
      %v251 = vld [vmem:[%s221 + $0xb8] sm:$0xff]
      %v252 = vld [vmem:[%s221 + $0xc0] sm:$0xff]
      %v253 = vld [vmem:[%s221 + $0xc8] sm:$0xff]
      %v254 = vld [vmem:[%s221 + $0xd0] sm:$0xff]
      %v255 = vld [vmem:[%s221 + $0xd8] sm:$0xff]
      %v256 = vld [vmem:[%s221 + $0xe0] sm:$0xff]
      %v257 = vld [vmem:[%s221 + $0xe8] sm:$0xff]
      %v258 = vld [vmem:[%s221 + $0xf0] sm:$0xff]
      %v259 = vld [vmem:[%s221 + $0xf8] sm:$0xff]
      %v260 = vld [vmem:[%s1] sm:$0xff]
      %v261 = vld [vmem:[%s1 + $0x8] sm:$0xff]
      %v262 = vld [vmem:[%s1 + $0x10] sm:$0xff]
      %v263 = vld [vmem:[%s2] sm:$0x1]
      %v265 = vlaneseq
      %v266 = vshrl.u32 %v265, 7
      %v267 = vsub.s32 0, %v266
      %v268 = vrot.slane %v263, %v267
      %vm270 = vcmask 195584
      %v272 = vsel %vm270, %v228, 0
      %v275 = vsel %vm270, %v229, 0
      %v278 = vsel %vm270, %v230, 0
      %v281 = vsel %vm270, %v231, 0
      %v284 = vsel %vm270, %v232, 0
      %v287 = vsel %vm270, %v233, 0
      %v290 = vsel %vm270, %v234, 0
      %v293 = vsel %vm270, %v235, 0
      %v296 = vsel %vm270, %v236, 0
      %v299 = vsel %vm270, %v237, 0
      %v302 = vsel %vm270, %v238, 0
      %v305 = vsel %vm270, %v239, 0
      %v308 = vsel %vm270, %v240, 0
      %v311 = vsel %vm270, %v241, 0
      %v314 = vsel %vm270, %v242, 0
      %v317 = vsel %vm270, %v243, 0
      %v320 = vsel %vm270, %v244, 0
      %v323 = vsel %vm270, %v245, 0
      %v326 = vsel %vm270, %v246, 0
      %v329 = vsel %vm270, %v247, 0
      %v332 = vsel %vm270, %v248, 0
      %v335 = vsel %vm270, %v249, 0
      %v338 = vsel %vm270, %v250, 0
      %v341 = vsel %vm270, %v251, 0
      %v344 = vsel %vm270, %v252, 0
      %v347 = vsel %vm270, %v253, 0
      %v350 = vsel %vm270, %v254, 0
      %v353 = vsel %vm270, %v255, 0
      %v356 = vsel %vm270, %v256, 0
      %v359 = vsel %vm270, %v257, 0
      %v362 = vsel %vm270, %v258, 0
      %v365 = vsel %vm270, %v259, 0
      %367 = vmatprep.subr.mxu0 0.0
      %368 = vmatpush1.msra.mxu0 %v260
      %369 = vmatprep.subr.mxu0 0.0
      %370 = vmatpush1.msra.mxu0 %v261
      %371 = vmatprep.subr.mxu0 0.0
      %372 = vmatpush1.msra.mxu0 %v262
      %373 = vmatprep.subr.mxu0 0.0
      %374 = vmatpush1.msra.mxu0 0.0
      %375 = vmatprep.subr.mxu0 0.0
      %376 = vmatpush1.msra.mxu0 0.0
      %377 = vmatprep.subr.mxu0 0.0
      %378 = vmatpush1.msra.mxu0 0.0
      %379 = vmatprep.subr.mxu0 0.0
      %380 = vmatpush1.msra.mxu0 0.0
      %381 = vmatprep.subr.mxu0 0.0
      %382 = vmatpush1.msra.mxu0 0.0
      %383 = vmatprep.subr.mxu0 0.0
      %384 = vmatpush1.msra.mxu0 0.0
      %385 = vmatprep.subr.mxu0 0.0
      %386 = vmatpush1.msra.mxu0 0.0
      %387 = vmatprep.subr.mxu0 0.0
      %388 = vmatpush1.msra.mxu0 0.0
      %389 = vmatprep.subr.mxu0 0.0
      %390 = vmatpush1.msra.mxu0 0.0
      %391 = vmatprep.subr.mxu0 0.0
      %392 = vmatpush1.msra.mxu0 0.0
      %393 = vmatprep.subr.mxu0 0.0
      %394 = vmatpush1.msra.mxu0 0.0
      %395 = vmatprep.subr.mxu0 0.0
      %396 = vmatpush1.msra.mxu0 0.0
      %397 = vmatprep.subr.mxu0 0.0
      %398 = vmatpush1.msra.mxu0 0.0
      %399 = vmatprep.subr.mxu0 0.0
      %400 = vmatpush1.msra.mxu0 0.0
      %401 = vmatprep.subr.mxu0 0.0
      %402 = vmatpush1.msra.mxu0 0.0
      %403 = vmatprep.subr.mxu0 0.0
      %404 = vmatpush1.msra.mxu0 0.0
      %405 = vmatprep.subr.mxu0 0.0
      %406 = vmatpush1.msra.mxu0 0.0
      %407 = vmatprep.subr.mxu0 0.0
      %408 = vmatpush1.msra.mxu0 0.0
      %409 = vmatprep.subr.mxu0 0.0
      %410 = vmatpush1.msra.mxu0 0.0
      %411 = vmatprep.subr.mxu0 0.0
      %412 = vmatpush1.msra.mxu0 0.0
      %413 = vmatprep.subr.mxu0 0.0
      %414 = vmatpush1.msra.mxu0 0.0
      %415 = vmatprep.subr.mxu0 0.0
      %416 = vmatpush1.msra.mxu0 0.0
      %417 = vmatprep.subr.mxu0 0.0
      %418 = vmatpush1.msra.mxu0 0.0
      %419 = vmatprep.subr.mxu0 0.0
      %420 = vmatpush1.msra.mxu0 0.0
      %421 = vmatprep.subr.mxu0 0.0
      %422 = vmatpush1.msra.mxu0 0.0
      %423 = vmatprep.subr.mxu0 0.0
      %424 = vmatpush1.msra.mxu0 0.0
      %425 = vmatprep.subr.mxu0 0.0
      %426 = vmatpush1.msra.mxu0 0.0
      %427 = vmatprep.subr.mxu0 0.0
      %428 = vmatpush1.msra.mxu0 0.0
      %429 = vmatprep.subr.mxu0 0.0
      %430 = vmatpush1.msra.mxu0 0.0
      %431 = vmatprep.mubr.f32.mxu0 0.0
      %432 = vmatmul.mubr.f32.gmra.mrb[0].mxu0 %v272
      %v433 = vpop.f32.mrb[0].mxu0
      %v434 = vadd.f32 %v268, %v433
      %v435 = vpop.f32.mrb[0].mxu0
      %436 = vmatprep.mubr.f32.mxu0 0.0
      %437 = vmatmul.mubr.f32.gmra.mrb[0].mxu0 %v275
      %v438 = vpop.f32.mrb[0].mxu0
      %v439 = vadd.f32 %v268, %v438
      %v440 = vpop.f32.mrb[0].mxu0
      %441 = vmatprep.mubr.f32.mxu0 0.0
      %442 = vmatmul.mubr.f32.gmra.mrb[0].mxu0 %v278
      %v443 = vpop.f32.mrb[0].mxu0
      %v444 = vadd.f32 %v268, %v443
      %v445 = vpop.f32.mrb[0].mxu0
      %446 = vmatprep.mubr.f32.mxu0 0.0
      %447 = vmatmul.mubr.f32.gmra.mrb[0].mxu0 %v281
      %v448 = vpop.f32.mrb[0].mxu0
      %v449 = vadd.f32 %v268, %v448
      %v450 = vpop.f32.mrb[0].mxu0
      %451 = vmatprep.mubr.f32.mxu0 0.0
      %452 = vmatmul.mubr.f32.gmra.mrb[0].mxu0 %v284
      %v453 = vpop.f32.mrb[0].mxu0
      %v454 = vadd.f32 %v268, %v453
      %v455 = vpop.f32.mrb[0].mxu0
      %456 = vmatprep.mubr.f32.mxu0 0.0
      %457 = vmatmul.mubr.f32.gmra.mrb[0].mxu0 %v287
      %v458 = vpop.f32.mrb[0].mxu0
      %v459 = vadd.f32 %v268, %v458
      %v460 = vpop.f32.mrb[0].mxu0
      %461 = vmatprep.mubr.f32.mxu0 0.0
      %462 = vmatmul.mubr.f32.gmra.mrb[0].mxu0 %v290
      %v463 = vpop.f32.mrb[0].mxu0
      %v464 = vadd.f32 %v268, %v463
      %v465 = vpop.f32.mrb[0].mxu0
      %466 = vmatprep.mubr.f32.mxu0 0.0
      %467 = vmatmul.mubr.f32.gmra.mrb[0].mxu0 %v293
      %v468 = vpop.f32.mrb[0].mxu0
      %v469 = vadd.f32 %v268, %v468
      %v470 = vpop.f32.mrb[0].mxu0
      %471 = vmatprep.mubr.f32.mxu0 0.0
      %472 = vmatmul.mubr.f32.gmra.mrb[0].mxu0 %v296
      %v473 = vpop.f32.mrb[0].mxu0
      %v474 = vadd.f32 %v268, %v473
      %v475 = vpop.f32.mrb[0].mxu0
      %476 = vmatprep.mubr.f32.mxu0 0.0
      %477 = vmatmul.mubr.f32.gmra.mrb[0].mxu0 %v299
      %v478 = vpop.f32.mrb[0].mxu0
      %v479 = vadd.f32 %v268, %v478
      %v480 = vpop.f32.mrb[0].mxu0
      %481 = vmatprep.mubr.f32.mxu0 0.0
      %482 = vmatmul.mubr.f32.gmra.mrb[0].mxu0 %v302
      %v483 = vpop.f32.mrb[0].mxu0
      %v484 = vadd.f32 %v268, %v483
      %v485 = vpop.f32.mrb[0].mxu0
      %486 = vmatprep.mubr.f32.mxu0 0.0
      %487 = vmatmul.mubr.f32.gmra.mrb[0].mxu0 %v305
      %v488 = vpop.f32.mrb[0].mxu0
      %v489 = vadd.f32 %v268, %v488
      %v490 = vpop.f32.mrb[0].mxu0
      %491 = vmatprep.mubr.f32.mxu0 0.0
      %492 = vmatmul.mubr.f32.gmra.mrb[0].mxu0 %v308
      %v493 = vpop.f32.mrb[0].mxu0
      %v494 = vadd.f32 %v268, %v493
      %v495 = vpop.f32.mrb[0].mxu0
      %496 = vmatprep.mubr.f32.mxu0 0.0
      %497 = vmatmul.mubr.f32.gmra.mrb[0].mxu0 %v311
      %v498 = vpop.f32.mrb[0].mxu0
      %v499 = vadd.f32 %v268, %v498
      %v500 = vpop.f32.mrb[0].mxu0
      %501 = vmatprep.mubr.f32.mxu0 0.0
      %502 = vmatmul.mubr.f32.gmra.mrb[0].mxu0 %v314
      %v503 = vpop.f32.mrb[0].mxu0
      %v504 = vadd.f32 %v268, %v503
      %v505 = vpop.f32.mrb[0].mxu0
      %506 = vmatprep.mubr.f32.mxu0 0.0
      %507 = vmatmul.mubr.f32.gmra.mrb[0].mxu0 %v317
      %v508 = vpop.f32.mrb[0].mxu0
      %v509 = vadd.f32 %v268, %v508
      %v510 = vpop.f32.mrb[0].mxu0
      %511 = vmatprep.mubr.f32.mxu0 0.0
      %512 = vmatmul.mubr.f32.gmra.mrb[0].mxu0 %v320
      %v513 = vpop.f32.mrb[0].mxu0
      %v514 = vadd.f32 %v268, %v513
      %v515 = vpop.f32.mrb[0].mxu0
      %516 = vmatprep.mubr.f32.mxu0 0.0
      %517 = vmatmul.mubr.f32.gmra.mrb[0].mxu0 %v323
      %v518 = vpop.f32.mrb[0].mxu0
      %v519 = vadd.f32 %v268, %v518
      %v520 = vpop.f32.mrb[0].mxu0
      %521 = vmatprep.mubr.f32.mxu0 0.0
      %522 = vmatmul.mubr.f32.gmra.mrb[0].mxu0 %v326
      %v523 = vpop.f32.mrb[0].mxu0
      %v524 = vadd.f32 %v268, %v523
      %v525 = vpop.f32.mrb[0].mxu0
      %526 = vmatprep.mubr.f32.mxu0 0.0
      %527 = vmatmul.mubr.f32.gmra.mrb[0].mxu0 %v329
      %v528 = vpop.f32.mrb[0].mxu0
      %v529 = vadd.f32 %v268, %v528
      %v530 = vpop.f32.mrb[0].mxu0
      %531 = vmatprep.mubr.f32.mxu0 0.0
      %532 = vmatmul.mubr.f32.gmra.mrb[0].mxu0 %v332
      %v533 = vpop.f32.mrb[0].mxu0
      %v534 = vadd.f32 %v268, %v533
      %v535 = vpop.f32.mrb[0].mxu0
      %536 = vmatprep.mubr.f32.mxu0 0.0
      %537 = vmatmul.mubr.f32.gmra.mrb[0].mxu0 %v335
      %v538 = vpop.f32.mrb[0].mxu0
      %v539 = vadd.f32 %v268, %v538
      %v540 = vpop.f32.mrb[0].mxu0
      %541 = vmatprep.mubr.f32.mxu0 0.0
      %542 = vmatmul.mubr.f32.gmra.mrb[0].mxu0 %v338
      %v543 = vpop.f32.mrb[0].mxu0
      %v544 = vadd.f32 %v268, %v543
      %v545 = vpop.f32.mrb[0].mxu0
      %546 = vmatprep.mubr.f32.mxu0 0.0
      %547 = vmatmul.mubr.f32.gmra.mrb[0].mxu0 %v341
      %v548 = vpop.f32.mrb[0].mxu0
      %v549 = vadd.f32 %v268, %v548
      %v550 = vpop.f32.mrb[0].mxu0
      %551 = vmatprep.mubr.f32.mxu0 0.0
      %552 = vmatmul.mubr.f32.gmra.mrb[0].mxu0 %v344
      %v553 = vpop.f32.mrb[0].mxu0
      %v554 = vadd.f32 %v268, %v553
      %v555 = vpop.f32.mrb[0].mxu0
      %556 = vmatprep.mubr.f32.mxu0 0.0
      %557 = vmatmul.mubr.f32.gmra.mrb[0].mxu0 %v347
      %v558 = vpop.f32.mrb[0].mxu0
      %v559 = vadd.f32 %v268, %v558
      %v560 = vpop.f32.mrb[0].mxu0
      %561 = vmatprep.mubr.f32.mxu0 0.0
      %562 = vmatmul.mubr.f32.gmra.mrb[0].mxu0 %v350
      %v563 = vpop.f32.mrb[0].mxu0
      %v564 = vadd.f32 %v268, %v563
      %v565 = vpop.f32.mrb[0].mxu0
      %566 = vmatprep.mubr.f32.mxu0 0.0
      %567 = vmatmul.mubr.f32.gmra.mrb[0].mxu0 %v353
      %v568 = vpop.f32.mrb[0].mxu0
      %v569 = vadd.f32 %v268, %v568
      %v570 = vpop.f32.mrb[0].mxu0
      %571 = vmatprep.mubr.f32.mxu0 0.0
      %572 = vmatmul.mubr.f32.gmra.mrb[0].mxu0 %v356
      %v573 = vpop.f32.mrb[0].mxu0
      %v574 = vadd.f32 %v268, %v573
      %v575 = vpop.f32.mrb[0].mxu0
      %576 = vmatprep.mubr.f32.mxu0 0.0
      %577 = vmatmul.mubr.f32.gmra.mrb[0].mxu0 %v359
      %v578 = vpop.f32.mrb[0].mxu0
      %v579 = vadd.f32 %v268, %v578
      %v580 = vpop.f32.mrb[0].mxu0
      %581 = vmatprep.mubr.f32.mxu0 0.0
      %582 = vmatmul.mubr.f32.gmra.mrb[0].mxu0 %v362
      %v583 = vpop.f32.mrb[0].mxu0
      %v584 = vadd.f32 %v268, %v583
      %v585 = vpop.f32.mrb[0].mxu0
      %586 = vmatprep.mubr.f32.mxu0 0.0
      %587 = vmatmul.mubr.f32.gmra.mrb[0].mxu0 %v365
      %v588 = vpop.f32.mrb[0].mxu0
      %v589 = vadd.f32 %v268, %v588
      %v590 = vpop.f32.mrb[0].mxu0
      %591 = vdwg.mxu0
      %v592 = vmul.f32 %v434, 0.5
      %v593 = vmul.f32 %v439, 0.5
      %v594 = vmul.f32 %v444, 0.5
      %v595 = vmul.f32 %v449, 0.5
      %v596 = vmul.f32 %v454, 0.5
      %v597 = vmul.f32 %v459, 0.5
      %v598 = vmul.f32 %v464, 0.5
      %v599 = vmul.f32 %v469, 0.5
      %v600 = vmul.f32 %v474, 0.5
      %v601 = vmul.f32 %v479, 0.5
      %v602 = vmul.f32 %v484, 0.5
      %v603 = vmul.f32 %v489, 0.5
      %v604 = vmul.f32 %v494, 0.5
      %v605 = vmul.f32 %v499, 0.5
      %v606 = vmul.f32 %v504, 0.5
      %v607 = vmul.f32 %v509, 0.5
      %v608 = vmul.f32 %v514, 0.5
      %v609 = vmul.f32 %v519, 0.5
      %v610 = vmul.f32 %v524, 0.5
      %v611 = vmul.f32 %v529, 0.5
      %v612 = vmul.f32 %v534, 0.5
      %v613 = vmul.f32 %v539, 0.5
      %v614 = vmul.f32 %v544, 0.5
      %v615 = vmul.f32 %v549, 0.5
      %v616 = vmul.f32 %v554, 0.5
      %v617 = vmul.f32 %v559, 0.5
      %v618 = vmul.f32 %v564, 0.5
      %v619 = vmul.f32 %v569, 0.5
      %v620 = vmul.f32 %v574, 0.5
      %v621 = vmul.f32 %v579, 0.5
      %v622 = vmul.f32 %v584, 0.5
      %v623 = vmul.f32 %v589, 0.5
      %v624 = vmul.f32 %v434, 0.70710677
      %v625 = vmul.f32 %v439, 0.70710677
      %v626 = vmul.f32 %v444, 0.70710677
      %v627 = vmul.f32 %v449, 0.70710677
      %v628 = vmul.f32 %v454, 0.70710677
      %v629 = vmul.f32 %v459, 0.70710677
      %v630 = vmul.f32 %v464, 0.70710677
      %v631 = vmul.f32 %v469, 0.70710677
      %v632 = vmul.f32 %v474, 0.70710677
      %v633 = vmul.f32 %v479, 0.70710677
      %v634 = vmul.f32 %v484, 0.70710677
      %v635 = vmul.f32 %v489, 0.70710677
      %v636 = vmul.f32 %v494, 0.70710677
      %v637 = vmul.f32 %v499, 0.70710677
      %v638 = vmul.f32 %v504, 0.70710677
      %v639 = vmul.f32 %v509, 0.70710677
      %v640 = vmul.f32 %v514, 0.70710677
      %v641 = vmul.f32 %v519, 0.70710677
      %v642 = vmul.f32 %v524, 0.70710677
      %v643 = vmul.f32 %v529, 0.70710677
      %v644 = vmul.f32 %v534, 0.70710677
      %v645 = vmul.f32 %v539, 0.70710677
      %v646 = vmul.f32 %v544, 0.70710677
      %v647 = vmul.f32 %v549, 0.70710677
      %v648 = vmul.f32 %v554, 0.70710677
      %v649 = vmul.f32 %v559, 0.70710677
      %v650 = vmul.f32 %v564, 0.70710677
      %v651 = vmul.f32 %v569, 0.70710677
      %v652 = vmul.f32 %v574, 0.70710677
      %v653 = vmul.f32 %v579, 0.70710677
      %v654 = vmul.f32 %v584, 0.70710677
      %v655 = vmul.f32 %v589, 0.70710677
      %v656 = verf.f32.pop %v624
      %v657 = verf.f32.pop %v625
      %v658 = verf.f32.pop %v626
      %v659 = verf.f32.pop %v627
      %v660 = verf.f32.pop %v628
      %v661 = verf.f32.pop %v629
      %v662 = verf.f32.pop %v630
      %v663 = verf.f32.pop %v631
      %v664 = verf.f32.pop %v632
      %v665 = verf.f32.pop %v633
      %v666 = verf.f32.pop %v634
      %v667 = verf.f32.pop %v635
      %v668 = verf.f32.pop %v636
      %v669 = verf.f32.pop %v637
      %v670 = verf.f32.pop %v638
      %v671 = verf.f32.pop %v639
      %v672 = verf.f32.pop %v640
      %v673 = verf.f32.pop %v641
      %v674 = verf.f32.pop %v642
      %v675 = verf.f32.pop %v643
      %v676 = verf.f32.pop %v644
      %v677 = verf.f32.pop %v645
      %v678 = verf.f32.pop %v646
      %v679 = verf.f32.pop %v647
      %v680 = verf.f32.pop %v648
      %v681 = verf.f32.pop %v649
      %v682 = verf.f32.pop %v650
      %v683 = verf.f32.pop %v651
      %v684 = verf.f32.pop %v652
      %v685 = verf.f32.pop %v653
      %v686 = verf.f32.pop %v654
      %v687 = verf.f32.pop %v655
      %v688 = vadd.f32 %v656, 1.0
      %v689 = vadd.f32 %v657, 1.0
      %v690 = vadd.f32 %v658, 1.0
      %v691 = vadd.f32 %v659, 1.0
      %v692 = vadd.f32 %v660, 1.0
      %v693 = vadd.f32 %v661, 1.0
      %v694 = vadd.f32 %v662, 1.0
      %v695 = vadd.f32 %v663, 1.0
      %v696 = vadd.f32 %v664, 1.0
      %v697 = vadd.f32 %v665, 1.0
      %v698 = vadd.f32 %v666, 1.0
      %v699 = vadd.f32 %v667, 1.0
      %v700 = vadd.f32 %v668, 1.0
      %v701 = vadd.f32 %v669, 1.0
      %v702 = vadd.f32 %v670, 1.0
      %v703 = vadd.f32 %v671, 1.0
      %v704 = vadd.f32 %v672, 1.0
      %v705 = vadd.f32 %v673, 1.0
      %v706 = vadd.f32 %v674, 1.0
      %v707 = vadd.f32 %v675, 1.0
      %v708 = vadd.f32 %v676, 1.0
      %v709 = vadd.f32 %v677, 1.0
      %v710 = vadd.f32 %v678, 1.0
      %v711 = vadd.f32 %v679, 1.0
      %v712 = vadd.f32 %v680, 1.0
      %v713 = vadd.f32 %v681, 1.0
      %v714 = vadd.f32 %v682, 1.0
      %v715 = vadd.f32 %v683, 1.0
      %v716 = vadd.f32 %v684, 1.0
      %v717 = vadd.f32 %v685, 1.0
      %v718 = vadd.f32 %v686, 1.0
      %v719 = vadd.f32 %v687, 1.0
      %v720 = vmul.f32 %v592, %v688
      %v721 = vmul.f32 %v593, %v689
      %v722 = vmul.f32 %v594, %v690
      %v723 = vmul.f32 %v595, %v691
      %v724 = vmul.f32 %v596, %v692
      %v725 = vmul.f32 %v597, %v693
      %v726 = vmul.f32 %v598, %v694
      %v727 = vmul.f32 %v599, %v695
      %v728 = vmul.f32 %v600, %v696
      %v729 = vmul.f32 %v601, %v697
      %v730 = vmul.f32 %v602, %v698
      %v731 = vmul.f32 %v603, %v699
      %v732 = vmul.f32 %v604, %v700
      %v733 = vmul.f32 %v605, %v701
      %v734 = vmul.f32 %v606, %v702
      %v735 = vmul.f32 %v607, %v703
      %v736 = vmul.f32 %v608, %v704
      %v737 = vmul.f32 %v609, %v705
      %v738 = vmul.f32 %v610, %v706
      %v739 = vmul.f32 %v611, %v707
      %v740 = vmul.f32 %v612, %v708
      %v741 = vmul.f32 %v613, %v709
      %v742 = vmul.f32 %v614, %v710
      %v743 = vmul.f32 %v615, %v711
      %v744 = vmul.f32 %v616, %v712
      %v745 = vmul.f32 %v617, %v713
      %v746 = vmul.f32 %v618, %v714
      %v747 = vmul.f32 %v619, %v715
      %v748 = vmul.f32 %v620, %v716
      %v749 = vmul.f32 %v621, %v717
      %v750 = vmul.f32 %v622, %v718
      %v751 = vmul.f32 %v623, %v719
      %752 = vst [vmem:[#allocation2] sm:$0xff] %v720
      %753 = vst [vmem:[#allocation2 + $0x8] sm:$0xff] %v721
      %754 = vst [vmem:[#allocation2 + $0x10] sm:$0xff] %v722
      %755 = vst [vmem:[#allocation2 + $0x18] sm:$0xff] %v723
      %756 = vst [vmem:[#allocation2 + $0x20] sm:$0xff] %v724
      %757 = vst [vmem:[#allocation2 + $0x28] sm:$0xff] %v725
      %758 = vst [vmem:[#allocation2 + $0x30] sm:$0xff] %v726
      %759 = vst [vmem:[#allocation2 + $0x38] sm:$0xff] %v727
      %760 = vst [vmem:[#allocation2 + $0x40] sm:$0xff] %v728
      %761 = vst [vmem:[#allocation2 + $0x48] sm:$0xff] %v729
      %762 = vst [vmem:[#allocation2 + $0x50] sm:$0xff] %v730
      %763 = vst [vmem:[#allocation2 + $0x58] sm:$0xff] %v731
      %764 = vst [vmem:[#allocation2 + $0x60] sm:$0xff] %v732
      %765 = vst [vmem:[#allocation2 + $0x68] sm:$0xff] %v733
      %766 = vst [vmem:[#allocation2 + $0x70] sm:$0xff] %v734
      %767 = vst [vmem:[#allocation2 + $0x78] sm:$0xff] %v735
      %768 = vst [vmem:[#allocation2 + $0x80] sm:$0xff] %v736
      %769 = vst [vmem:[#allocation2 + $0x88] sm:$0xff] %v737
      %770 = vst [vmem:[#allocation2 + $0x90] sm:$0xff] %v738
      %771 = vst [vmem:[#allocation2 + $0x98] sm:$0xff] %v739
      %772 = vst [vmem:[#allocation2 + $0xa0] sm:$0xff] %v740
      %773 = vst [vmem:[#allocation2 + $0xa8] sm:$0xff] %v741
      %774 = vst [vmem:[#allocation2 + $0xb0] sm:$0xff] %v742
      %775 = vst [vmem:[#allocation2 + $0xb8] sm:$0xff] %v743
      %776 = vst [vmem:[#allocation2 + $0xc0] sm:$0xff] %v744
      %777 = vst [vmem:[#allocation2 + $0xc8] sm:$0xff] %v745
      %778 = vst [vmem:[#allocation2 + $0xd0] sm:$0xff] %v746
      %779 = vst [vmem:[#allocation2 + $0xd8] sm:$0xff] %v747
      %780 = vst [vmem:[#allocation2 + $0xe0] sm:$0xff] %v748
      %781 = vst [vmem:[#allocation2 + $0xe8] sm:$0xff] %v749
      %782 = vst [vmem:[#allocation2 + $0xf0] sm:$0xff] %v750
      %783 = vst [vmem:[#allocation2 + $0xf8] sm:$0xff] %v751
      %v784 = vld [vmem:[%s3] sm:$0x1]
      %v785 = vld [vmem:[#allocation2] sm:$0xff]
      %v786 = vld [vmem:[#allocation2 + $0x8] sm:$0xff]
      %v787 = vld [vmem:[#allocation2 + $0x10] sm:$0xff]
      %v788 = vld [vmem:[#allocation2 + $0x18] sm:$0xff]
      %v789 = vld [vmem:[#allocation2 + $0x20] sm:$0xff]
      %v790 = vld [vmem:[#allocation2 + $0x28] sm:$0xff]
      %v791 = vld [vmem:[#allocation2 + $0x30] sm:$0xff]
      %v792 = vld [vmem:[#allocation2 + $0x38] sm:$0xff]
      %v793 = vld [vmem:[#allocation2 + $0x40] sm:$0xff]
      %v794 = vld [vmem:[#allocation2 + $0x48] sm:$0xff]
      %v795 = vld [vmem:[#allocation2 + $0x50] sm:$0xff]
      %v796 = vld [vmem:[#allocation2 + $0x58] sm:$0xff]
      %v797 = vld [vmem:[#allocation2 + $0x60] sm:$0xff]
      %v798 = vld [vmem:[#allocation2 + $0x68] sm:$0xff]
      %v799 = vld [vmem:[#allocation2 + $0x70] sm:$0xff]
      %v800 = vld [vmem:[#allocation2 + $0x78] sm:$0xff]
      %v801 = vld [vmem:[#allocation2 + $0x80] sm:$0xff]
      %v802 = vld [vmem:[#allocation2 + $0x88] sm:$0xff]
      %v803 = vld [vmem:[#allocation2 + $0x90] sm:$0xff]
      %v804 = vld [vmem:[#allocation2 + $0x98] sm:$0xff]
      %v805 = vld [vmem:[#allocation2 + $0xa0] sm:$0xff]
      %v806 = vld [vmem:[#allocation2 + $0xa8] sm:$0xff]
      %v807 = vld [vmem:[#allocation2 + $0xb0] sm:$0xff]
      %v808 = vld [vmem:[#allocation2 + $0xb8] sm:$0xff]
      %v809 = vld [vmem:[#allocation2 + $0xc0] sm:$0xff]
      %v810 = vld [vmem:[#allocation2 + $0xc8] sm:$0xff]
      %v811 = vld [vmem:[#allocation2 + $0xd0] sm:$0xff]
      %v812 = vld [vmem:[#allocation2 + $0xd8] sm:$0xff]
      %v813 = vld [vmem:[#allocation2 + $0xe0] sm:$0xff]
      %v814 = vld [vmem:[#allocation2 + $0xe8] sm:$0xff]
      %v815 = vld [vmem:[#allocation2 + $0xf0] sm:$0xff]
      %v816 = vld [vmem:[#allocation2 + $0xf8] sm:$0xff]
      %v817 = vld [vmem:[#allocation3] sm:$0x1]
      %819 = vset.pattern.permute.xlu0 0
      %820 = vperm.xlu0 %819, %v817
      %v821 = vpop.permute.xlu0 %820
      %v823 = vlaneseq
      %v824 = vshrl.u32 %v823, 7
      %v825 = vsub.s32 0, %v824
      %v826 = vrot.slane %v821, %v825
      %827 = vmatprep.subr.mxu0 0.0
      %828 = vmatpush1.xpose.msra.mxu0 %v785
      %829 = vmatprep.subr.mxu0 0.0
      %830 = vmatpush1.xpose.msra.mxu0 %v786
      %831 = vmatprep.subr.mxu0 0.0
      %832 = vmatpush1.xpose.msra.mxu0 %v787
      %833 = vmatprep.subr.mxu0 0.0
      %834 = vmatpush1.xpose.msra.mxu0 %v788
      %835 = vmatprep.subr.mxu0 0.0
      %836 = vmatpush1.xpose.msra.mxu0 %v789
      %837 = vmatprep.subr.mxu0 0.0
      %838 = vmatpush1.xpose.msra.mxu0 %v790
      %839 = vmatprep.subr.mxu0 0.0
      %840 = vmatpush1.xpose.msra.mxu0 %v791
      %841 = vmatprep.subr.mxu0 0.0
      %842 = vmatpush1.xpose.msra.mxu0 %v792
      %843 = vmatprep.subr.mxu0 0.0
      %844 = vmatpush1.xpose.msra.mxu0 %v793
      %845 = vmatprep.subr.mxu0 0.0
      %846 = vmatpush1.xpose.msra.mxu0 %v794
      %847 = vmatprep.subr.mxu0 0.0
      %848 = vmatpush1.xpose.msra.mxu0 %v795
      %849 = vmatprep.subr.mxu0 0.0
      %850 = vmatpush1.xpose.msra.mxu0 %v796
      %851 = vmatprep.subr.mxu0 0.0
      %852 = vmatpush1.xpose.msra.mxu0 %v797
      %853 = vmatprep.subr.mxu0 0.0
      %854 = vmatpush1.xpose.msra.mxu0 %v798
      %855 = vmatprep.subr.mxu0 0.0
      %856 = vmatpush1.xpose.msra.mxu0 %v799
      %857 = vmatprep.subr.mxu0 0.0
      %858 = vmatpush1.xpose.msra.mxu0 %v800
      %859 = vmatprep.subr.mxu0 0.0
      %860 = vmatpush1.xpose.msra.mxu0 %v801
      %861 = vmatprep.subr.mxu0 0.0
      %862 = vmatpush1.xpose.msra.mxu0 %v802
      %863 = vmatprep.subr.mxu0 0.0
      %864 = vmatpush1.xpose.msra.mxu0 %v803
      %865 = vmatprep.subr.mxu0 0.0
      %866 = vmatpush1.xpose.msra.mxu0 %v804
      %867 = vmatprep.subr.mxu0 0.0
      %868 = vmatpush1.xpose.msra.mxu0 %v805
      %869 = vmatprep.subr.mxu0 0.0
      %870 = vmatpush1.xpose.msra.mxu0 %v806
      %871 = vmatprep.subr.mxu0 0.0
      %872 = vmatpush1.xpose.msra.mxu0 %v807
      %873 = vmatprep.subr.mxu0 0.0
      %874 = vmatpush1.xpose.msra.mxu0 %v808
      %875 = vmatprep.subr.mxu0 0.0
      %876 = vmatpush1.xpose.msra.mxu0 %v809
      %877 = vmatprep.subr.mxu0 0.0
      %878 = vmatpush1.xpose.msra.mxu0 %v810
      %879 = vmatprep.subr.mxu0 0.0
      %880 = vmatpush1.xpose.msra.mxu0 %v811
      %881 = vmatprep.subr.mxu0 0.0
      %882 = vmatpush1.xpose.msra.mxu0 %v812
      %883 = vmatprep.subr.mxu0 0.0
      %884 = vmatpush1.xpose.msra.mxu0 %v813
      %885 = vmatprep.subr.mxu0 0.0
      %886 = vmatpush1.xpose.msra.mxu0 %v814
      %887 = vmatprep.subr.mxu0 0.0
      %888 = vmatpush1.xpose.msra.mxu0 %v815
      %889 = vmatprep.subr.mxu0 0.0
      %890 = vmatpush1.xpose.msra.mxu0 %v816
      %891 = vmatprep.mubr.f32.mxu0 0.0
      %892 = vmatmul.mubr.f32.gmra.mrb[0].mxu0 %v784
      %v893 = vpop.f32.mrb[0].mxu0
      %v894 = vadd.f32 %v826, %v893
      %v895 = vpop.f32.mrb[0].mxu0
      %v896 = vadd.f32 %v826, %v895
      %897 = vdwg.mxu0
      %v900 = vcombine.low %v894, %v896
      %v902 = vunpack.c.l.s4 1966171168
      %v903 = vunpack.c.0.s8 %v902
      %v904 = vlaneseq
      %v905 = vshrl.u32 %v904, 7
      %v906 = vsub.s32 %v903, %v905
      %v907 = vrot.slane %v900, %v906
      %v909 = vunpack.c.l.s4 1966171168
      %v910 = vunpack.c.0.s8 %v909
      %v911 = vlaneseq
      %v912 = vshrl.u32 %v911, 7
      %v913 = vsub.s32 %v910, %v912
      %v914 = vrot.slane %v907, %v913
      %v916 = vlaneseq
      %vm917 = vcmp.ge.s32.totalorder %v916, 0
      %vm918 = vcmp.lt.s32.totalorder %v916, 256
      %vm919 = vmand %vm917, %vm918
      %920 = vst.msk [vmem:[%s226] sm:$0x3] %vm919, %v914
      %s921 = smul.u32 2, %s18
      %p922 = scmp.lt.s32.totalorder %s921, 3
      %s923 = scalar_select %p922, %s921, 3
      %s924 = scalar_lea.vmem %s5, %s923
      // Predicated region
      $region41: #{fno2d_piano_forward.11} parent=39 // pred_check
        %p925 = pneg %p146
      $region42: #{fno2d_piano_forward.11} parent=39 // pred_check_branch
        %927 = sbr.rel (%p925) target = $region44
      $region43: #{fno2d_piano_forward.11} parent=39 // pred_region
        %s928 = smul.u32 2, %s18
      $region44: #{fno2d_piano_forward.11} parent=39 // pred_fallthru
        _
    $region40: #{fno2d_piano_forward.11} parent=5 // pred_fallthru
      _
    %p929 = scmp.le.s32.totalorder 2, %s13
    // Predicated region
    $region45: #{fno2d_piano_forward.11} parent=5 // pred_check
      %p930 = pneg %p929
    $region46: #{fno2d_piano_forward.11} parent=5 // pred_check_branch
      %932 = sbr.rel (%p930) target = $region48
    $region47: #{fno2d_piano_forward.11} parent=5 // pred_region
      %s933 = ssub.s32 %s13, 2
      // Predicated region
      $region49: #{fno2d_piano_forward.11} parent=47 // pred_check
        %p934 = pneg %p152
      $region50: #{fno2d_piano_forward.11} parent=47 // pred_check_branch
        %936 = sbr.rel (%p934) target = $region52
      $region51: #{fno2d_piano_forward.11} parent=47 // pred_region
        %s937 = smul.u32 2, %s19
        %p938 = scmp.lt.s32.totalorder %s937, 3
        %s939 = scalar_select %p938, %s937, 3
        %s940 = scalar_lea.vmem %s5, %s939
      $region52: #{fno2d_piano_forward.11} parent=47 // pred_fallthru
        _
    $region48: #{fno2d_piano_forward.11} parent=5 // pred_fallthru
      _
  $region6: #{fno2d_piano_forward.11} parent=0 // loop_footer
    %s17 = sadd.s32 1, %s13
  $region7: #{fno2d_piano_forward.11} parent=0 // loop_footer_branch
    %12 = sbr.rel target = $region3
  $region8: #{fno2d_piano_forward.11} parent=0 // loop_exit
    _

</llo_original>
